<compile_context>
chip_gen: v6e
topology: v6e:2x2x1
jax: 0.10.0
libtpu: 0.0.40
codegen_flags: <defaults>
</compile_context>

<pallas_src>
import functools

import jax
import jax.numpy as jnp
from jax import lax
from jax.experimental import pallas as pl
from jax.experimental.pallas import tpu as pltpu

_BN_EPS = 1e-5


# ----------------------------------------------------------------------------
# fused forward kernel
# ----------------------------------------------------------------------------
def _fused_forward_kernel(*refs, conv_cfg, n_hidden_lin, N, L0):
    """Entire Cnn1d forward for a whole (small) batch in one kernel invocation.

    Activation layout for the conv stage: (C, N*L)  -- batch folded into lanes.
    Linear stage keeps the batch folded along lanes via block-diagonal weights;
    the final output is (1, N*nclass) and is un-folded host-side.
    """
    f32 = jnp.float32
    bf16 = jnp.bfloat16

    refs = list(refs)
    i = 0
    x_ref = refs[i]; i += 1
    conv_refs = []
    for _ in conv_cfg:
        conv_refs.append((refs[i], refs[i + 1])); i += 2
    lin_refs = []
    for _ in range(n_hidden_lin):
        lin_refs.append((refs[i], refs[i + 1])); i += 2
    wout_ref, bout_ref, o_ref = refs[i], refs[i + 1], refs[i + 2]

    x = x_ref[...]                                     # (Cin0, N*L0) f32
    L = L0

    # -------------------- conv stage --------------------
    for (cin, cout, K, pool), (w_ref, p_ref) in zip(conv_cfg, conv_refs):
        NL = N * L
        lane = lax.broadcasted_iota(jnp.int32, (cin, NL), 1)
        if (L & (L - 1)) == 0:                         # position within each sample
            pos = jnp.bitwise_and(lane, L - 1)
        else:
            pos = lane % L
        left = (K - 1) // 2                            # 'same', dilation=1, zeros

        acc = jnp.zeros((cout, NL), f32)
        for t in range(K):                             # small static tap loop
            off = t - left
            if off == 0:
                xs = x
            else:
                # xs[:, l] = x[:, l + off], zero outside each sample's [0, L)
                xs = pltpu.roll(x, (-off) % NL, axis=1)
                valid = jnp.logical_and(pos >= -off, pos < L - off)
                xs = jnp.where(valid, xs, 0.0)
            acc = acc + jnp.dot(w_ref[t], xs.astype(bf16),
                                preferred_element_type=f32)

        cb, s1, t1, s2, t2 = p_ref[0], p_ref[1], p_ref[2], p_ref[3], p_ref[4]
        y = jnp.maximum(acc + cb, 0.0)                 # Conv1d bias + ReLU
        y = jnp.maximum(y * s1 + t1, 0.0)              # BatchNorm (eval) + ReLU

        if pool is not None and pool > 1:              # MaxPool1d(pool)
            m = y
            for j in range(1, pool):
                m = jnp.maximum(m, pltpu.roll(y, (-j) % NL, axis=1))
            NLo = NL // pool
            r_i = lax.broadcasted_iota(jnp.int32, (NL, NLo), 0)
            c_i = lax.broadcasted_iota(jnp.int32, (NL, NLo), 1)
            sel = (r_i == c_i * pool).astype(f32)      # built in-kernel, no input
            y = jnp.dot(m, sel, preferred_element_type=f32)
            L = L // pool
        x = y * s2 + t2                                # trailing BatchNorm (eval)

    # -------------------- linear head --------------------
    # x: (C_last, N*L_last); flatten is folded into the first linear weight,
    # which is stored per conv-channel as block-diagonal (N*L_last, N*O1) slabs.
    C_last = conv_cfg[-1][1]
    w1_ref, p1_ref = lin_refs[0]
    acc = jnp.zeros((1, w1_ref.shape[-1]), f32)
    for c in range(C_last):
        acc = acc + jnp.dot(x[c:c + 1, :].astype(bf16), w1_ref[c],
                            preferred_element_type=f32)
    y = jnp.maximum(acc + p1_ref[0], 0.0) * p1_ref[1] + p1_ref[2]   # Lin+ReLU+BN

    for w_ref, p_ref in lin_refs[1:]:                  # remaining hidden linears
        z = jnp.dot(y.astype(bf16), w_ref[...], preferred_element_type=f32)
        y = jnp.maximum(z + p_ref[0], 0.0) * p_ref[1] + p_ref[2]

    out = jnp.dot(y.astype(bf16), wout_ref[...], preferred_element_type=f32)
    o_ref[...] = out + bout_ref[...]                   # final Linear (no act/BN)


# ----------------------------------------------------------------------------
# wrapper
# ----------------------------------------------------------------------------
def _full_spec(a):
    nd = a.ndim
    return pl.BlockSpec(a.shape, lambda i, _nd=nd: (0,) * _nd)


def forward(params, x):
    N, cin0, L0 = x.shape
    meta = params["meta"]
    assert N == meta["N"], "batch size is baked into the folded linear weights"
    nclass = meta["nclass"]

    # lane-dense layout: (N, Cin, L) -> (Cin, N*L) (host-side layout plumbing)
    xt = jnp.transpose(x, (1, 0, 2)).reshape(cin0, N * L0)

    conv_cfg = tuple(layer["cfg"] for layer in params["conv"])
    args = [xt]
    for layer in params["conv"]:
        args += [layer["w"], layer["p"]]
    for layer in params["lin"]:
        args += [layer["w"], layer["p"]]
    args += [params["out"]["w"], params["out"]["b"]]

    kernel = functools.partial(
        _fused_forward_kernel,
        conv_cfg=conv_cfg,
        n_hidden_lin=len(params["lin"]),
        N=N, L0=L0)

    out = pl.pallas_call(
        kernel,
        out_shape=jax.ShapeDtypeStruct((1, N * nclass), jnp.float32),
        grid=(1,),
        in_specs=[_full_spec(a) for a in args],
        out_specs=pl.BlockSpec((1, N * nclass), lambda i: (0, 0)),
        compiler_params=pltpu.CompilerParams(
            dimension_semantics=("arbitrary",)),
    )(*args)
    return out.reshape(N, nclass)


# ----------------------------------------------------------------------------
# deterministic parameter initialisation (mirrors module __init__ shapes)
# ----------------------------------------------------------------------------
def _keygen(key):
    while True:
        key, sub = jax.random.split(key)
        yield sub


def _bn_fold(kg, C):
    gamma = jax.random.uniform(next(kg), (C,), minval=0.8, maxval=1.2)
    beta = jax.random.uniform(next(kg), (C,), minval=-0.1, maxval=0.1)
    mean = jax.random.uniform(next(kg), (C,), minval=-0.1, maxval=0.1)
    var = jax.random.uniform(next(kg), (C,), minval=0.5, maxval=1.5)
    scale = gamma / jnp.sqrt(var + _BN_EPS)
    shift = beta - mean * scale
    return scale, shift


def init_params(key, *, channels, kernels, strides, pools, sizes, N, L0):
    assert all(s == 1 for s in strides), "only stride=1 ('same') is implemented"
    assert len(sizes) >= 3, "expect at least one hidden LinearLayer"
    kg = _keygen(key)
    eye = jnp.eye(N, dtype=jnp.float32)

    conv, L = [], L0
    for i in range(len(kernels)):
        cin, cout, K, p = channels[i], channels[i + 1], kernels[i], pools[i]
        bound = 1.0 / (cin * K) ** 0.5
        w = jax.random.uniform(next(kg), (cout, cin, K), minval=-bound, maxval=bound)
        cb = jax.random.uniform(next(kg), (cout,), minval=-bound, maxval=bound)
        s1, t1 = _bn_fold(kg, cout)                     # BN inside ConvLayer
        s2, t2 = _bn_fold(kg, cout)                     # trailing BN in ConvLayers
        conv.append({
            "w": jnp.transpose(w, (2, 0, 1)).astype(jnp.bfloat16),   # (K, Cout, Cin)
            "p": jnp.stack([cb, s1, t1, s2, t2]).reshape(5, cout, 1).astype(jnp.float32),
            "cfg": (cin, cout, K, p),
        })
        if p and p > 1:
            assert L % p == 0
            L //= p

    C_last = channels[-1]
    F = C_last * L
    assert sizes[0] == F, (sizes[0], F)

    lin = []
    # first hidden LinearLayer -- flatten folded in, block-diagonal over batch
    in_f, out_f = sizes[0], sizes[1]
    bound = 1.0 / in_f ** 0.5
    w = jax.random.uniform(next(kg), (out_f, in_f), minval=-bound, maxval=bound)
    b = jax.random.uniform(next(kg), (out_f,), minval=-bound, maxval=bound)
    s, t = _bn_fold(kg, out_f)
    w_r = w.reshape(out_f, C_last, L)                                 # (O, C, L)
    w3 = jnp.stack([jnp.kron(eye, w_r[:, c, :].T) for c in range(C_last)])
    lin.append({
        "w": w3.astype(jnp.bfloat16),                                 # (C, N*L, N*O)
        "p": jnp.stack([jnp.tile(b, N), jnp.tile(s, N), jnp.tile(t, N)]
                       ).reshape(3, 1, N * out_f).astype(jnp.float32),
    })
    prev = out_f
    # remaining hidden LinearLayers
    for out_f in sizes[2:-1]:
        bound = 1.0 / prev ** 0.5
        w = jax.random.uniform(next(kg), (out_f, prev), minval=-bound, maxval=bound)
        b = jax.random.uniform(next(kg), (out_f,), minval=-bound, maxval=bound)
        s, t = _bn_fold(kg, out_f)
        lin.append({
            "w": jnp.kron(eye, w.T).astype(jnp.bfloat16),             # (N*in, N*out)
            "p": jnp.stack([jnp.tile(b, N), jnp.tile(s, N), jnp.tile(t, N)]
                           ).reshape(3, 1, N * out_f).astype(jnp.float32),
        })
        prev = out_f

    # final plain Linear
    nclass = sizes[-1]
    bound = 1.0 / prev ** 0.5
    w = jax.random.uniform(next(kg), (nclass, prev), minval=-bound, maxval=bound)
    b = jax.random.uniform(next(kg), (nclass,), minval=-bound, maxval=bound)
    out = {"w": jnp.kron(eye, w.T).astype(jnp.bfloat16),
           "b": jnp.tile(b, N).reshape(1, N * nclass).astype(jnp.float32)}

    return {"conv": conv, "lin": lin, "out": out,
            "meta": {"N": N, "L0": L0, "nclass": nclass}}


# ----------------------------------------------------------------------------
if __name__ == "__main__":
    # small config consistent with Cnn1d:
    #   conv_dict: channels=[2,8,8], kernels=[3,3], strides=[1,1], pool=[2,2], act=ReLU
    #   linear_dict: sizes=[128, 32, 3], act=ReLU   (128 = 8ch * 64/(2*2))
    N, Cin, L = 2, 2, 64
    channels = [2, 8, 8]
    kernels = [3, 3]
    strides = [1, 1]
    pools = [2, 2]
    nclass = 3
    sizes = [channels[-1] * (L // (pools[0] * pools[1])), 32, nclass]

    key = jax.random.PRNGKey(0)
    kp, kx = jax.random.split(key)
    params = init_params(kp, channels=channels, kernels=kernels, strides=strides,
                         pools=pools, sizes=sizes, N=N, L0=L)
    x = jax.random.normal(kx, (N, Cin, L), dtype=jnp.float32)

    fwd = jax.jit(lambda inp: forward(params, inp))
    y = fwd(x)
    jax.block_until_ready(y)
    assert y.shape == (N, nclass)
    print("KERNEL_OK")
</pallas_src>

<mosaic_0001>
module attributes {stable_mosaic.version = 11 : i64} {
  func.func @_fused_forward_kernel(%arg0: i32, %arg1: memref<2x128xf32, #tpu.memory_space<vmem>>, %arg2: memref<3x8x2xbf16, #tpu.memory_space<vmem>>, %arg3: memref<5x8x1xf32, #tpu.memory_space<vmem>>, %arg4: memref<3x8x8xbf16, #tpu.memory_space<vmem>>, %arg5: memref<5x8x1xf32, #tpu.memory_space<vmem>>, %arg6: memref<8x32x64xbf16, #tpu.memory_space<vmem>>, %arg7: memref<3x1x64xf32, #tpu.memory_space<vmem>>, %arg8: memref<64x6xbf16, #tpu.memory_space<vmem>>, %arg9: memref<1x6xf32, #tpu.memory_space<vmem>>, %arg10: memref<1x6xf32, #tpu.memory_space<vmem>>) attributes {dimension_semantics = [#tpu.dimension_semantics<arbitrary>], iteration_bounds = array<i64: 1>, scalar_prefetch = 0 : i64, scratch_operands = 0 : i64, tpu.core_type = #tpu.core_type<tc>, window_params = [{pipeline_mode = #tpu.pipeline_mode<synchronous>, transform_indices = @transform_0, window_bounds = array<i64: 2, 128>}, {pipeline_mode = #tpu.pipeline_mode<synchronous>, transform_indices = @transform_1, window_bounds = array<i64: 3, 8, 2>}, {pipeline_mode = #tpu.pipeline_mode<synchronous>, transform_indices = @transform_2, window_bounds = array<i64: 5, 8, 1>}, {pipeline_mode = #tpu.pipeline_mode<synchronous>, transform_indices = @transform_3, window_bounds = array<i64: 3, 8, 8>}, {pipeline_mode = #tpu.pipeline_mode<synchronous>, transform_indices = @transform_4, window_bounds = array<i64: 5, 8, 1>}, {pipeline_mode = #tpu.pipeline_mode<synchronous>, transform_indices = @transform_5, window_bounds = array<i64: 8, 32, 64>}, {pipeline_mode = #tpu.pipeline_mode<synchronous>, transform_indices = @transform_6, window_bounds = array<i64: 3, 1, 64>}, {pipeline_mode = #tpu.pipeline_mode<synchronous>, transform_indices = @transform_7, window_bounds = array<i64: 64, 6>}, {pipeline_mode = #tpu.pipeline_mode<synchronous>, transform_indices = @transform_8, window_bounds = array<i64: 1, 6>}, {pipeline_mode = #tpu.pipeline_mode<synchronous>, transform_indices = @transform_9, window_bounds = array<i64: 1, 6>}]} {
    %c0 = arith.constant 0 : index
    %c0_0 = arith.constant 0 : index
    %0 = vector.load %arg1[%c0, %c0_0] : memref<2x128xf32, #tpu.memory_space<vmem>>, vector<2x128xf32>
    %1 = tpu.iota {dimensions = array<i32: 1>} : vector<2x128xi32>
    %c63_i32 = arith.constant 63 : i32
    %2 = vector.broadcast %c63_i32 : i32 to vector<2x128xi32>
    %3 = arith.andi %1, %2 : vector<2x128xi32>
    %cst = arith.constant 0.000000e+00 : f32
    %4 = vector.broadcast %cst : f32 to vector<8x128xf32>
    %c1_i32 = arith.constant 1 : i32
    %5 = tpu.dynamic_rotate %0 by %c1_i32 dim 1 : vector<2x128xf32>, i32 -> vector<2x128xf32>
    %c1_i32_1 = arith.constant 1 : i32
    %6 = vector.broadcast %c1_i32_1 : i32 to vector<2x128xi32>
    %7 = arith.cmpi sge, %3, %6 : vector<2x128xi32>
    %c65_i32 = arith.constant 65 : i32
    %8 = vector.broadcast %c65_i32 : i32 to vector<2x128xi32>
    %9 = arith.cmpi slt, %3, %8 : vector<2x128xi32>
    %10 = arith.andi %7, %9 : vector<2x128xi1>
    %cst_2 = arith.constant 0.000000e+00 : f32
    %11 = vector.broadcast %cst_2 : f32 to vector<2x128xf32>
    %12 = arith.select %10, %5, %11 : vector<2x128xi1>, vector<2x128xf32>
    %c0_3 = arith.constant 0 : index
    %c0_4 = arith.constant 0 : index
    %c0_5 = arith.constant 0 : index
    %13 = vector.load %arg2[%c0_3, %c0_4, %c0_5] : memref<3x8x2xbf16, #tpu.memory_space<vmem>>, vector<1x8x2xbf16>
    %14 = vector.shape_cast %13 : vector<1x8x2xbf16> to vector<8x2xbf16>
    %15 = arith.truncf %12 : vector<2x128xf32> to vector<2x128xbf16>
    %cst_6 = arith.constant dense<0.000000e+00> : vector<8x128xf32>
    %16 = tpu.matmul %14, %15, %cst_6 {dimension_numbers = #tpu.dot_dimension_numbers<[1], [0], [0], [1], [0, 0, 1, 1], [], []>} : vector<8x2xbf16>, vector<2x128xbf16>, vector<8x128xf32> -> vector<8x128xf32>
    %17 = arith.addf %4, %16 : vector<8x128xf32>
    %c1 = arith.constant 1 : index
    %c0_7 = arith.constant 0 : index
    %c0_8 = arith.constant 0 : index
    %18 = vector.load %arg2[%c1, %c0_7, %c0_8] : memref<3x8x2xbf16, #tpu.memory_space<vmem>>, vector<1x8x2xbf16>
    %19 = vector.shape_cast %18 : vector<1x8x2xbf16> to vector<8x2xbf16>
    %20 = arith.truncf %0 : vector<2x128xf32> to vector<2x128xbf16>
    %cst_9 = arith.constant dense<0.000000e+00> : vector<8x128xf32>
    %21 = tpu.matmul %19, %20, %cst_9 {dimension_numbers = #tpu.dot_dimension_numbers<[1], [0], [0], [1], [0, 0, 1, 1], [], []>} : vector<8x2xbf16>, vector<2x128xbf16>, vector<8x128xf32> -> vector<8x128xf32>
    %22 = arith.addf %17, %21 : vector<8x128xf32>
    %c127_i32 = arith.constant 127 : i32
    %23 = tpu.dynamic_rotate %0 by %c127_i32 dim 1 : vector<2x128xf32>, i32 -> vector<2x128xf32>
    %c-1_i32 = arith.constant -1 : i32
    %24 = vector.broadcast %c-1_i32 : i32 to vector<2x128xi32>
    %25 = arith.cmpi sge, %3, %24 : vector<2x128xi32>
    %c63_i32_10 = arith.constant 63 : i32
    %26 = vector.broadcast %c63_i32_10 : i32 to vector<2x128xi32>
    %27 = arith.cmpi slt, %3, %26 : vector<2x128xi32>
    %28 = arith.andi %25, %27 : vector<2x128xi1>
    %cst_11 = arith.constant 0.000000e+00 : f32
    %29 = vector.broadcast %cst_11 : f32 to vector<2x128xf32>
    %30 = arith.select %28, %23, %29 : vector<2x128xi1>, vector<2x128xf32>
    %c2 = arith.constant 2 : index
    %c0_12 = arith.constant 0 : index
    %c0_13 = arith.constant 0 : index
    %31 = vector.load %arg2[%c2, %c0_12, %c0_13] : memref<3x8x2xbf16, #tpu.memory_space<vmem>>, vector<1x8x2xbf16>
    %32 = vector.shape_cast %31 : vector<1x8x2xbf16> to vector<8x2xbf16>
    %33 = arith.truncf %30 : vector<2x128xf32> to vector<2x128xbf16>
    %cst_14 = arith.constant dense<0.000000e+00> : vector<8x128xf32>
    %34 = tpu.matmul %32, %33, %cst_14 {dimension_numbers = #tpu.dot_dimension_numbers<[1], [0], [0], [1], [0, 0, 1, 1], [], []>} : vector<8x2xbf16>, vector<2x128xbf16>, vector<8x128xf32> -> vector<8x128xf32>
    %35 = arith.addf %22, %34 : vector<8x128xf32>
    %c0_15 = arith.constant 0 : index
    %c0_16 = arith.constant 0 : index
    %c0_17 = arith.constant 0 : index
    %36 = vector.load %arg3[%c0_15, %c0_16, %c0_17] : memref<5x8x1xf32, #tpu.memory_space<vmem>>, vector<1x8x1xf32>
    %37 = vector.shape_cast %36 : vector<1x8x1xf32> to vector<8x1xf32>
    %c1_18 = arith.constant 1 : index
    %c0_19 = arith.constant 0 : index
    %c0_20 = arith.constant 0 : index
    %38 = vector.load %arg3[%c1_18, %c0_19, %c0_20] : memref<5x8x1xf32, #tpu.memory_space<vmem>>, vector<1x8x1xf32>
    %39 = vector.shape_cast %38 : vector<1x8x1xf32> to vector<8x1xf32>
    %c2_21 = arith.constant 2 : index
    %c0_22 = arith.constant 0 : index
    %c0_23 = arith.constant 0 : index
    %40 = vector.load %arg3[%c2_21, %c0_22, %c0_23] : memref<5x8x1xf32, #tpu.memory_space<vmem>>, vector<1x8x1xf32>
    %41 = vector.shape_cast %40 : vector<1x8x1xf32> to vector<8x1xf32>
    %c3 = arith.constant 3 : index
    %c0_24 = arith.constant 0 : index
    %c0_25 = arith.constant 0 : index
    %42 = vector.load %arg3[%c3, %c0_24, %c0_25] : memref<5x8x1xf32, #tpu.memory_space<vmem>>, vector<1x8x1xf32>
    %43 = vector.shape_cast %42 : vector<1x8x1xf32> to vector<8x1xf32>
    %c4 = arith.constant 4 : index
    %c0_26 = arith.constant 0 : index
    %c0_27 = arith.constant 0 : index
    %44 = vector.load %arg3[%c4, %c0_26, %c0_27] : memref<5x8x1xf32, #tpu.memory_space<vmem>>, vector<1x8x1xf32>
    %45 = vector.shape_cast %44 : vector<1x8x1xf32> to vector<8x1xf32>
    %46 = vector.broadcast %37 : vector<8x1xf32> to vector<8x128xf32>
    %47 = arith.addf %35, %46 : vector<8x128xf32>
    %cst_28 = arith.constant 0.000000e+00 : f32
    %48 = vector.broadcast %cst_28 : f32 to vector<8x128xf32>
    %49 = arith.maximumf %47, %48 : vector<8x128xf32>
    %50 = vector.broadcast %39 : vector<8x1xf32> to vector<8x128xf32>
    %51 = arith.mulf %49, %50 : vector<8x128xf32>
    %52 = vector.broadcast %41 : vector<8x1xf32> to vector<8x128xf32>
    %53 = arith.addf %51, %52 : vector<8x128xf32>
    %cst_29 = arith.constant 0.000000e+00 : f32
    %54 = vector.broadcast %cst_29 : f32 to vector<8x128xf32>
    %55 = arith.maximumf %53, %54 : vector<8x128xf32>
    %c127_i32_30 = arith.constant 127 : i32
    %56 = tpu.dynamic_rotate %55 by %c127_i32_30 dim 1 : vector<8x128xf32>, i32 -> vector<8x128xf32>
    %57 = arith.maximumf %55, %56 : vector<8x128xf32>
    %58 = tpu.iota {dimensions = array<i32: 0>} : vector<128x64xi32>
    %59 = tpu.iota {dimensions = array<i32: 1>} : vector<128x64xi32>
    %c2_i32 = arith.constant 2 : i32
    %60 = vector.broadcast %c2_i32 : i32 to vector<128x64xi32>
    %61 = arith.muli %59, %60 : vector<128x64xi32>
    %62 = arith.cmpi eq, %58, %61 : vector<128x64xi32>
    %63 = arith.extui %62 : vector<128x64xi1> to vector<128x64xi32>
    %64 = arith.sitofp %63 : vector<128x64xi32> to vector<128x64xf32>
    %cst_31 = arith.constant dense<0.000000e+00> : vector<8x64xf32>
    %65 = tpu.matmul %57, %64, %cst_31 {dimension_numbers = #tpu.dot_dimension_numbers<[1], [0], [0], [1], [0, 0, 1, 1], [], []>} : vector<8x128xf32>, vector<128x64xf32>, vector<8x64xf32> -> vector<8x64xf32>
    %66 = vector.broadcast %43 : vector<8x1xf32> to vector<8x64xf32>
    %67 = arith.mulf %65, %66 : vector<8x64xf32>
    %68 = vector.broadcast %45 : vector<8x1xf32> to vector<8x64xf32>
    %69 = arith.addf %67, %68 : vector<8x64xf32>
    %70 = tpu.iota {dimensions = array<i32: 1>} : vector<8x64xi32>
    %c31_i32 = arith.constant 31 : i32
    %71 = vector.broadcast %c31_i32 : i32 to vector<8x64xi32>
    %72 = arith.andi %70, %71 : vector<8x64xi32>
    %cst_32 = arith.constant 0.000000e+00 : f32
    %73 = vector.broadcast %cst_32 : f32 to vector<8x64xf32>
    %c1_i32_33 = arith.constant 1 : i32
    %74 = tpu.dynamic_rotate %69 by %c1_i32_33 dim 1 : vector<8x64xf32>, i32 -> vector<8x64xf32>
    %c1_i32_34 = arith.constant 1 : i32
    %75 = vector.broadcast %c1_i32_34 : i32 to vector<8x64xi32>
    %76 = arith.cmpi sge, %72, %75 : vector<8x64xi32>
    %c33_i32 = arith.constant 33 : i32
    %77 = vector.broadcast %c33_i32 : i32 to vector<8x64xi32>
    %78 = arith.cmpi slt, %72, %77 : vector<8x64xi32>
    %79 = arith.andi %76, %78 : vector<8x64xi1>
    %cst_35 = arith.constant 0.000000e+00 : f32
    %80 = vector.broadcast %cst_35 : f32 to vector<8x64xf32>
    %81 = arith.select %79, %74, %80 : vector<8x64xi1>, vector<8x64xf32>
    %c0_36 = arith.constant 0 : index
    %c0_37 = arith.constant 0 : index
    %c0_38 = arith.constant 0 : index
    %82 = vector.load %arg4[%c0_36, %c0_37, %c0_38] : memref<3x8x8xbf16, #tpu.memory_space<vmem>>, vector<1x8x8xbf16>
    %83 = vector.shape_cast %82 : vector<1x8x8xbf16> to vector<8x8xbf16>
    %84 = arith.truncf %81 : vector<8x64xf32> to vector<8x64xbf16>
    %cst_39 = arith.constant dense<0.000000e+00> : vector<8x64xf32>
    %85 = tpu.matmul %83, %84, %cst_39 {dimension_numbers = #tpu.dot_dimension_numbers<[1], [0], [0], [1], [0, 0, 1, 1], [], []>} : vector<8x8xbf16>, vector<8x64xbf16>, vector<8x64xf32> -> vector<8x64xf32>
    %86 = arith.addf %73, %85 : vector<8x64xf32>
    %c1_40 = arith.constant 1 : index
    %c0_41 = arith.constant 0 : index
    %c0_42 = arith.constant 0 : index
    %87 = vector.load %arg4[%c1_40, %c0_41, %c0_42] : memref<3x8x8xbf16, #tpu.memory_space<vmem>>, vector<1x8x8xbf16>
    %88 = vector.shape_cast %87 : vector<1x8x8xbf16> to vector<8x8xbf16>
    %89 = arith.truncf %69 : vector<8x64xf32> to vector<8x64xbf16>
    %cst_43 = arith.constant dense<0.000000e+00> : vector<8x64xf32>
    %90 = tpu.matmul %88, %89, %cst_43 {dimension_numbers = #tpu.dot_dimension_numbers<[1], [0], [0], [1], [0, 0, 1, 1], [], []>} : vector<8x8xbf16>, vector<8x64xbf16>, vector<8x64xf32> -> vector<8x64xf32>
    %91 = arith.addf %86, %90 : vector<8x64xf32>
    %c63_i32_44 = arith.constant 63 : i32
    %92 = tpu.dynamic_rotate %69 by %c63_i32_44 dim 1 : vector<8x64xf32>, i32 -> vector<8x64xf32>
    %c-1_i32_45 = arith.constant -1 : i32
    %93 = vector.broadcast %c-1_i32_45 : i32 to vector<8x64xi32>
    %94 = arith.cmpi sge, %72, %93 : vector<8x64xi32>
    %c31_i32_46 = arith.constant 31 : i32
    %95 = vector.broadcast %c31_i32_46 : i32 to vector<8x64xi32>
    %96 = arith.cmpi slt, %72, %95 : vector<8x64xi32>
    %97 = arith.andi %94, %96 : vector<8x64xi1>
    %cst_47 = arith.constant 0.000000e+00 : f32
    %98 = vector.broadcast %cst_47 : f32 to vector<8x64xf32>
    %99 = arith.select %97, %92, %98 : vector<8x64xi1>, vector<8x64xf32>
    %c2_48 = arith.constant 2 : index
    %c0_49 = arith.constant 0 : index
    %c0_50 = arith.constant 0 : index
    %100 = vector.load %arg4[%c2_48, %c0_49, %c0_50] : memref<3x8x8xbf16, #tpu.memory_space<vmem>>, vector<1x8x8xbf16>
    %101 = vector.shape_cast %100 : vector<1x8x8xbf16> to vector<8x8xbf16>
    %102 = arith.truncf %99 : vector<8x64xf32> to vector<8x64xbf16>
    %cst_51 = arith.constant dense<0.000000e+00> : vector<8x64xf32>
    %103 = tpu.matmul %101, %102, %cst_51 {dimension_numbers = #tpu.dot_dimension_numbers<[1], [0], [0], [1], [0, 0, 1, 1], [], []>} : vector<8x8xbf16>, vector<8x64xbf16>, vector<8x64xf32> -> vector<8x64xf32>
    %104 = arith.addf %91, %103 : vector<8x64xf32>
    %c0_52 = arith.constant 0 : index
    %c0_53 = arith.constant 0 : index
    %c0_54 = arith.constant 0 : index
    %105 = vector.load %arg5[%c0_52, %c0_53, %c0_54] : memref<5x8x1xf32, #tpu.memory_space<vmem>>, vector<1x8x1xf32>
    %106 = vector.shape_cast %105 : vector<1x8x1xf32> to vector<8x1xf32>
    %c1_55 = arith.constant 1 : index
    %c0_56 = arith.constant 0 : index
    %c0_57 = arith.constant 0 : index
    %107 = vector.load %arg5[%c1_55, %c0_56, %c0_57] : memref<5x8x1xf32, #tpu.memory_space<vmem>>, vector<1x8x1xf32>
    %108 = vector.shape_cast %107 : vector<1x8x1xf32> to vector<8x1xf32>
    %c2_58 = arith.constant 2 : index
    %c0_59 = arith.constant 0 : index
    %c0_60 = arith.constant 0 : index
    %109 = vector.load %arg5[%c2_58, %c0_59, %c0_60] : memref<5x8x1xf32, #tpu.memory_space<vmem>>, vector<1x8x1xf32>
    %110 = vector.shape_cast %109 : vector<1x8x1xf32> to vector<8x1xf32>
    %c3_61 = arith.constant 3 : index
    %c0_62 = arith.constant 0 : index
    %c0_63 = arith.constant 0 : index
    %111 = vector.load %arg5[%c3_61, %c0_62, %c0_63] : memref<5x8x1xf32, #tpu.memory_space<vmem>>, vector<1x8x1xf32>
    %112 = vector.shape_cast %111 : vector<1x8x1xf32> to vector<8x1xf32>
    %c4_64 = arith.constant 4 : index
    %c0_65 = arith.constant 0 : index
    %c0_66 = arith.constant 0 : index
    %113 = vector.load %arg5[%c4_64, %c0_65, %c0_66] : memref<5x8x1xf32, #tpu.memory_space<vmem>>, vector<1x8x1xf32>
    %114 = vector.shape_cast %113 : vector<1x8x1xf32> to vector<8x1xf32>
    %115 = vector.broadcast %106 : vector<8x1xf32> to vector<8x64xf32>
    %116 = arith.addf %104, %115 : vector<8x64xf32>
    %cst_67 = arith.constant 0.000000e+00 : f32
    %117 = vector.broadcast %cst_67 : f32 to vector<8x64xf32>
    %118 = arith.maximumf %116, %117 : vector<8x64xf32>
    %119 = vector.broadcast %108 : vector<8x1xf32> to vector<8x64xf32>
    %120 = arith.mulf %118, %119 : vector<8x64xf32>
    %121 = vector.broadcast %110 : vector<8x1xf32> to vector<8x64xf32>
    %122 = arith.addf %120, %121 : vector<8x64xf32>
    %cst_68 = arith.constant 0.000000e+00 : f32
    %123 = vector.broadcast %cst_68 : f32 to vector<8x64xf32>
    %124 = arith.maximumf %122, %123 : vector<8x64xf32>
    %c63_i32_69 = arith.constant 63 : i32
    %125 = tpu.dynamic_rotate %124 by %c63_i32_69 dim 1 : vector<8x64xf32>, i32 -> vector<8x64xf32>
    %126 = arith.maximumf %124, %125 : vector<8x64xf32>
    %127 = tpu.iota {dimensions = array<i32: 0>} : vector<64x32xi32>
    %128 = tpu.iota {dimensions = array<i32: 1>} : vector<64x32xi32>
    %c2_i32_70 = arith.constant 2 : i32
    %129 = vector.broadcast %c2_i32_70 : i32 to vector<64x32xi32>
    %130 = arith.muli %128, %129 : vector<64x32xi32>
    %131 = arith.cmpi eq, %127, %130 : vector<64x32xi32>
    %132 = arith.extui %131 : vector<64x32xi1> to vector<64x32xi32>
    %133 = arith.sitofp %132 : vector<64x32xi32> to vector<64x32xf32>
    %cst_71 = arith.constant dense<0.000000e+00> : vector<8x32xf32>
    %134 = tpu.matmul %126, %133, %cst_71 {dimension_numbers = #tpu.dot_dimension_numbers<[1], [0], [0], [1], [0, 0, 1, 1], [], []>} : vector<8x64xf32>, vector<64x32xf32>, vector<8x32xf32> -> vector<8x32xf32>
    %135 = vector.broadcast %112 : vector<8x1xf32> to vector<8x32xf32>
    %136 = arith.mulf %134, %135 : vector<8x32xf32>
    %137 = vector.broadcast %114 : vector<8x1xf32> to vector<8x32xf32>
    %138 = arith.addf %136, %137 : vector<8x32xf32>
    %cst_72 = arith.constant 0.000000e+00 : f32
    %139 = vector.broadcast %cst_72 : f32 to vector<1x64xf32>
    %140 = vector.extract_strided_slice %138 {offsets = [0, 0], sizes = [1, 32], strides = [1, 1]} : vector<8x32xf32> to vector<1x32xf32>
    %141 = arith.truncf %140 : vector<1x32xf32> to vector<1x32xbf16>
    %c0_73 = arith.constant 0 : index
    %c0_74 = arith.constant 0 : index
    %c0_75 = arith.constant 0 : index
    %142 = vector.load %arg6[%c0_73, %c0_74, %c0_75] : memref<8x32x64xbf16, #tpu.memory_space<vmem>>, vector<1x32x64xbf16>
    %143 = vector.shape_cast %142 : vector<1x32x64xbf16> to vector<32x64xbf16>
    %cst_76 = arith.constant dense<0.000000e+00> : vector<1x64xf32>
    %144 = tpu.matmul %141, %143, %cst_76 {dimension_numbers = #tpu.dot_dimension_numbers<[1], [0], [0], [1], [0, 0, 1, 1], [], []>} : vector<1x32xbf16>, vector<32x64xbf16>, vector<1x64xf32> -> vector<1x64xf32>
    %145 = arith.addf %139, %144 : vector<1x64xf32>
    %146 = vector.extract_strided_slice %138 {offsets = [1, 0], sizes = [1, 32], strides = [1, 1]} : vector<8x32xf32> to vector<1x32xf32>
    %147 = arith.truncf %146 : vector<1x32xf32> to vector<1x32xbf16>
    %c1_77 = arith.constant 1 : index
    %c0_78 = arith.constant 0 : index
    %c0_79 = arith.constant 0 : index
    %148 = vector.load %arg6[%c1_77, %c0_78, %c0_79] : memref<8x32x64xbf16, #tpu.memory_space<vmem>>, vector<1x32x64xbf16>
    %149 = vector.shape_cast %148 : vector<1x32x64xbf16> to vector<32x64xbf16>
    %cst_80 = arith.constant dense<0.000000e+00> : vector<1x64xf32>
    %150 = tpu.matmul %147, %149, %cst_80 {dimension_numbers = #tpu.dot_dimension_numbers<[1], [0], [0], [1], [0, 0, 1, 1], [], []>} : vector<1x32xbf16>, vector<32x64xbf16>, vector<1x64xf32> -> vector<1x64xf32>
    %151 = arith.addf %145, %150 : vector<1x64xf32>
    %152 = vector.extract_strided_slice %138 {offsets = [2, 0], sizes = [1, 32], strides = [1, 1]} : vector<8x32xf32> to vector<1x32xf32>
    %153 = arith.truncf %152 : vector<1x32xf32> to vector<1x32xbf16>
    %c2_81 = arith.constant 2 : index
    %c0_82 = arith.constant 0 : index
    %c0_83 = arith.constant 0 : index
    %154 = vector.load %arg6[%c2_81, %c0_82, %c0_83] : memref<8x32x64xbf16, #tpu.memory_space<vmem>>, vector<1x32x64xbf16>
    %155 = vector.shape_cast %154 : vector<1x32x64xbf16> to vector<32x64xbf16>
    %cst_84 = arith.constant dense<0.000000e+00> : vector<1x64xf32>
    %156 = tpu.matmul %153, %155, %cst_84 {dimension_numbers = #tpu.dot_dimension_numbers<[1], [0], [0], [1], [0, 0, 1, 1], [], []>} : vector<1x32xbf16>, vector<32x64xbf16>, vector<1x64xf32> -> vector<1x64xf32>
    %157 = arith.addf %151, %156 : vector<1x64xf32>
    %158 = vector.extract_strided_slice %138 {offsets = [3, 0], sizes = [1, 32], strides = [1, 1]} : vector<8x32xf32> to vector<1x32xf32>
    %159 = arith.truncf %158 : vector<1x32xf32> to vector<1x32xbf16>
    %c3_85 = arith.constant 3 : index
    %c0_86 = arith.constant 0 : index
    %c0_87 = arith.constant 0 : index
    %160 = vector.load %arg6[%c3_85, %c0_86, %c0_87] : memref<8x32x64xbf16, #tpu.memory_space<vmem>>, vector<1x32x64xbf16>
    %161 = vector.shape_cast %160 : vector<1x32x64xbf16> to vector<32x64xbf16>
    %cst_88 = arith.constant dense<0.000000e+00> : vector<1x64xf32>
    %162 = tpu.matmul %159, %161, %cst_88 {dimension_numbers = #tpu.dot_dimension_numbers<[1], [0], [0], [1], [0, 0, 1, 1], [], []>} : vector<1x32xbf16>, vector<32x64xbf16>, vector<1x64xf32> -> vector<1x64xf32>
    %163 = arith.addf %157, %162 : vector<1x64xf32>
    %164 = vector.extract_strided_slice %138 {offsets = [4, 0], sizes = [1, 32], strides = [1, 1]} : vector<8x32xf32> to vector<1x32xf32>
    %165 = arith.truncf %164 : vector<1x32xf32> to vector<1x32xbf16>
    %c4_89 = arith.constant 4 : index
    %c0_90 = arith.constant 0 : index
    %c0_91 = arith.constant 0 : index
    %166 = vector.load %arg6[%c4_89, %c0_90, %c0_91] : memref<8x32x64xbf16, #tpu.memory_space<vmem>>, vector<1x32x64xbf16>
    %167 = vector.shape_cast %166 : vector<1x32x64xbf16> to vector<32x64xbf16>
    %cst_92 = arith.constant dense<0.000000e+00> : vector<1x64xf32>
    %168 = tpu.matmul %165, %167, %cst_92 {dimension_numbers = #tpu.dot_dimension_numbers<[1], [0], [0], [1], [0, 0, 1, 1], [], []>} : vector<1x32xbf16>, vector<32x64xbf16>, vector<1x64xf32> -> vector<1x64xf32>
    %169 = arith.addf %163, %168 : vector<1x64xf32>
    %170 = vector.extract_strided_slice %138 {offsets = [5, 0], sizes = [1, 32], strides = [1, 1]} : vector<8x32xf32> to vector<1x32xf32>
    %171 = arith.truncf %170 : vector<1x32xf32> to vector<1x32xbf16>
    %c5 = arith.constant 5 : index
    %c0_93 = arith.constant 0 : index
    %c0_94 = arith.constant 0 : index
    %172 = vector.load %arg6[%c5, %c0_93, %c0_94] : memref<8x32x64xbf16, #tpu.memory_space<vmem>>, vector<1x32x64xbf16>
    %173 = vector.shape_cast %172 : vector<1x32x64xbf16> to vector<32x64xbf16>
    %cst_95 = arith.constant dense<0.000000e+00> : vector<1x64xf32>
    %174 = tpu.matmul %171, %173, %cst_95 {dimension_numbers = #tpu.dot_dimension_numbers<[1], [0], [0], [1], [0, 0, 1, 1], [], []>} : vector<1x32xbf16>, vector<32x64xbf16>, vector<1x64xf32> -> vector<1x64xf32>
    %175 = arith.addf %169, %174 : vector<1x64xf32>
    %176 = vector.extract_strided_slice %138 {offsets = [6, 0], sizes = [1, 32], strides = [1, 1]} : vector<8x32xf32> to vector<1x32xf32>
    %177 = arith.truncf %176 : vector<1x32xf32> to vector<1x32xbf16>
    %c6 = arith.constant 6 : index
    %c0_96 = arith.constant 0 : index
    %c0_97 = arith.constant 0 : index
    %178 = vector.load %arg6[%c6, %c0_96, %c0_97] : memref<8x32x64xbf16, #tpu.memory_space<vmem>>, vector<1x32x64xbf16>
    %179 = vector.shape_cast %178 : vector<1x32x64xbf16> to vector<32x64xbf16>
    %cst_98 = arith.constant dense<0.000000e+00> : vector<1x64xf32>
    %180 = tpu.matmul %177, %179, %cst_98 {dimension_numbers = #tpu.dot_dimension_numbers<[1], [0], [0], [1], [0, 0, 1, 1], [], []>} : vector<1x32xbf16>, vector<32x64xbf16>, vector<1x64xf32> -> vector<1x64xf32>
    %181 = arith.addf %175, %180 : vector<1x64xf32>
    %182 = vector.extract_strided_slice %138 {offsets = [7, 0], sizes = [1, 32], strides = [1, 1]} : vector<8x32xf32> to vector<1x32xf32>
    %183 = arith.truncf %182 : vector<1x32xf32> to vector<1x32xbf16>
    %c7 = arith.constant 7 : index
    %c0_99 = arith.constant 0 : index
    %c0_100 = arith.constant 0 : index
    %184 = vector.load %arg6[%c7, %c0_99, %c0_100] : memref<8x32x64xbf16, #tpu.memory_space<vmem>>, vector<1x32x64xbf16>
    %185 = vector.shape_cast %184 : vector<1x32x64xbf16> to vector<32x64xbf16>
    %cst_101 = arith.constant dense<0.000000e+00> : vector<1x64xf32>
    %186 = tpu.matmul %183, %185, %cst_101 {dimension_numbers = #tpu.dot_dimension_numbers<[1], [0], [0], [1], [0, 0, 1, 1], [], []>} : vector<1x32xbf16>, vector<32x64xbf16>, vector<1x64xf32> -> vector<1x64xf32>
    %187 = arith.addf %181, %186 : vector<1x64xf32>
    %c0_102 = arith.constant 0 : index
    %c0_103 = arith.constant 0 : index
    %c0_104 = arith.constant 0 : index
    %188 = vector.load %arg7[%c0_102, %c0_103, %c0_104] : memref<3x1x64xf32, #tpu.memory_space<vmem>>, vector<1x1x64xf32>
    %189 = vector.shape_cast %188 : vector<1x1x64xf32> to vector<1x64xf32>
    %190 = arith.addf %187, %189 : vector<1x64xf32>
    %cst_105 = arith.constant 0.000000e+00 : f32
    %191 = vector.broadcast %cst_105 : f32 to vector<1x64xf32>
    %192 = arith.maximumf %190, %191 : vector<1x64xf32>
    %c1_106 = arith.constant 1 : index
    %c0_107 = arith.constant 0 : index
    %c0_108 = arith.constant 0 : index
    %193 = vector.load %arg7[%c1_106, %c0_107, %c0_108] : memref<3x1x64xf32, #tpu.memory_space<vmem>>, vector<1x1x64xf32>
    %194 = vector.shape_cast %193 : vector<1x1x64xf32> to vector<1x64xf32>
    %195 = arith.mulf %192, %194 : vector<1x64xf32>
    %c2_109 = arith.constant 2 : index
    %c0_110 = arith.constant 0 : index
    %c0_111 = arith.constant 0 : index
    %196 = vector.load %arg7[%c2_109, %c0_110, %c0_111] : memref<3x1x64xf32, #tpu.memory_space<vmem>>, vector<1x1x64xf32>
    %197 = vector.shape_cast %196 : vector<1x1x64xf32> to vector<1x64xf32>
    %198 = arith.addf %195, %197 : vector<1x64xf32>
    %199 = arith.truncf %198 : vector<1x64xf32> to vector<1x64xbf16>
    %c0_112 = arith.constant 0 : index
    %c0_113 = arith.constant 0 : index
    %200 = vector.load %arg8[%c0_112, %c0_113] : memref<64x6xbf16, #tpu.memory_space<vmem>>, vector<64x6xbf16>
    %cst_114 = arith.constant dense<0.000000e+00> : vector<1x6xf32>
    %201 = tpu.matmul %199, %200, %cst_114 {dimension_numbers = #tpu.dot_dimension_numbers<[1], [0], [0], [1], [0, 0, 1, 1], [], []>} : vector<1x64xbf16>, vector<64x6xbf16>, vector<1x6xf32> -> vector<1x6xf32>
    %c0_115 = arith.constant 0 : index
    %c0_116 = arith.constant 0 : index
    %202 = vector.load %arg9[%c0_115, %c0_116] : memref<1x6xf32, #tpu.memory_space<vmem>>, vector<1x6xf32>
    %203 = arith.addf %201, %202 : vector<1x6xf32>
    %c0_117 = arith.constant 0 : index
    %c0_118 = arith.constant 0 : index
    %204 = vector.load %arg10[%c0_117, %c0_118] : memref<1x6xf32, #tpu.memory_space<vmem>>, vector<1x6xf32>
    tpu.vector_store %arg10[%c0_117, %c0_118], %203 {strides = array<i32>} : memref<1x6xf32, #tpu.memory_space<vmem>>, vector<1x6xf32>,
    return
  }
  func.func @transform_0(%arg0: i32) -> (i32, i32) {
    %c0_i32 = arith.constant 0 : i32
    %c0_i32_0 = arith.constant 0 : i32
    %c0_i32_1 = arith.constant 0 : i32
    return %c0_i32, %c0_i32_0 : i32, i32
  }
  func.func @transform_1(%arg0: i32) -> (i32, i32, i32) {
    %c0_i32 = arith.constant 0 : i32
    %c0_i32_0 = arith.constant 0 : i32
    %c0_i32_1 = arith.constant 0 : i32
    %c0_i32_2 = arith.constant 0 : i32
    return %c0_i32, %c0_i32_0, %c0_i32_1 : i32, i32, i32
  }
  func.func @transform_2(%arg0: i32) -> (i32, i32, i32) {
    %c0_i32 = arith.constant 0 : i32
    %c0_i32_0 = arith.constant 0 : i32
    %c0_i32_1 = arith.constant 0 : i32
    %c0_i32_2 = arith.constant 0 : i32
    return %c0_i32, %c0_i32_0, %c0_i32_1 : i32, i32, i32
  }
  func.func @transform_3(%arg0: i32) -> (i32, i32, i32) {
    %c0_i32 = arith.constant 0 : i32
    %c0_i32_0 = arith.constant 0 : i32
    %c0_i32_1 = arith.constant 0 : i32
    %c0_i32_2 = arith.constant 0 : i32
    return %c0_i32, %c0_i32_0, %c0_i32_1 : i32, i32, i32
  }
  func.func @transform_4(%arg0: i32) -> (i32, i32, i32) {
    %c0_i32 = arith.constant 0 : i32
    %c0_i32_0 = arith.constant 0 : i32
    %c0_i32_1 = arith.constant 0 : i32
    %c0_i32_2 = arith.constant 0 : i32
    return %c0_i32, %c0_i32_0, %c0_i32_1 : i32, i32, i32
  }
  func.func @transform_5(%arg0: i32) -> (i32, i32, i32) {
    %c0_i32 = arith.constant 0 : i32
    %c0_i32_0 = arith.constant 0 : i32
    %c0_i32_1 = arith.constant 0 : i32
    %c0_i32_2 = arith.constant 0 : i32
    return %c0_i32, %c0_i32_0, %c0_i32_1 : i32, i32, i32
  }
  func.func @transform_6(%arg0: i32) -> (i32, i32, i32) {
    %c0_i32 = arith.constant 0 : i32
    %c0_i32_0 = arith.constant 0 : i32
    %c0_i32_1 = arith.constant 0 : i32
    %c0_i32_2 = arith.constant 0 : i32
    return %c0_i32, %c0_i32_0, %c0_i32_1 : i32, i32, i32
  }
  func.func @transform_7(%arg0: i32) -> (i32, i32) {
    %c0_i32 = arith.constant 0 : i32
    %c0_i32_0 = arith.constant 0 : i32
    %c0_i32_1 = arith.constant 0 : i32
    return %c0_i32, %c0_i32_0 : i32, i32
  }
  func.func @transform_8(%arg0: i32) -> (i32, i32) {
    %c0_i32 = arith.constant 0 : i32
    %c0_i32_0 = arith.constant 0 : i32
    %c0_i32_1 = arith.constant 0 : i32
    return %c0_i32, %c0_i32_0 : i32, i32
  }
  func.func @transform_9(%arg0: i32) -> (i32, i32) {
    %c0_i32 = arith.constant 0 : i32
    %c0_i32_0 = arith.constant 0 : i32
    %c0_i32_1 = arith.constant 0 : i32
    return %c0_i32, %c0_i32_0 : i32, i32
  }
}

</mosaic_0001>

<llo_original>
// kernel: _lambda_.1
$region0: #{_lambda_.1}
  #allocation0 [shape = 'u32[]', space=smem, size = 0x4, offset = 0x4, fixed_abs, tag = 'smem constant byte address 0x4 - core index']
  #allocation1 [shape = 'u32[144,128]{1,0:T(1,128)}', space=vmem, size = 0x12000, scoped, tag = 'internal scratch']
  %s0 = inlined_call_operand.vmem [shape: f32[2,128], index: 0, kind: input, shape index: {}]
  %s1 = inlined_call_operand.hbm [shape: bf16[3,8,2], index: 1, kind: input, shape index: {}]
  %s2 = inlined_call_operand.hbm [shape: f32[5,8,1], index: 2, kind: input, shape index: {}]
  %s3 = inlined_call_operand.vmem [shape: bf16[3,8,8], index: 3, kind: input, shape index: {}]
  %s4 = inlined_call_operand.hbm [shape: f32[5,8,1], index: 4, kind: input, shape index: {}]
  %s5 = inlined_call_operand.hbm [shape: bf16[8,32,64], index: 5, kind: input, shape index: {}]
  %s6 = inlined_call_operand.vmem [shape: f32[3,1,64], index: 6, kind: input, shape index: {}]
  %s7 = inlined_call_operand.hbm [shape: bf16[64,6], index: 7, kind: input, shape index: {}]
  %s8 = inlined_call_operand.vmem [shape: f32[1,6], index: 8, kind: input, shape index: {}]
  %s9 = inlined_call_operand.vmem [shape: f32[1,6], index: 9, kind: output, shape index: {}]
  %s10 = sld [smem:[#allocation0]]
  $region66: #{_lambda_.1} parent=0
    _
  %s12 = ssub.s32 1, %s10
  %s13 = scalar_select 0, %s12, %s10
  $region1: #{_lambda_.1} parent=0
    #allocation2 [shape = 'u8[6144]{0}', space=vmem, size = 0x1800, scoped, tag = 'input window, operand 1, single buffered']
    #allocation3 [shape = 's32[1]{0}', space=sflag, size = 0x4, scoped, tag = 'scoped memory for _lambda_.1']
    #allocation4 [shape = 'u8[20480]{0}', space=vmem, size = 0x5000, scoped, tag = 'input window, operand 2, single buffered']
    #allocation5 [shape = 's32[1]{0}', space=sflag, size = 0x4, scoped, tag = 'scoped memory for _lambda_.1']
    #allocation6 [shape = 'u8[20480]{0}', space=vmem, size = 0x5000, scoped, tag = 'input window, operand 4, single buffered']
    #allocation7 [shape = 'u8[65536]{0}', space=vmem, size = 0x10000, scoped, tag = 'input window, operand 5, single buffered']
    #allocation8 [shape = 's32[1]{0}', space=sflag, size = 0x4, scoped, tag = 'scoped memory for _lambda_.1']
    #allocation9 [shape = 'u8[16384]{0}', space=vmem, size = 0x4000, scoped, tag = 'input window, operand 7, single buffered']
    %14 = vsyncpa [#allocation3], 0
    %15 = vsyncpa [#allocation5], 0
    %16 = vsyncpa [#allocation8], 0
    // Predicated region
    $region2: #{_lambda_.1} parent=1 // pred_check
      _
    $region3: #{_lambda_.1} parent=1 // pred_check_branch
      %18 = sbr.rel (0) target = $region5
    $region4: #{_lambda_.1} parent=1 // pred_region
      _
    $region5: #{_lambda_.1} parent=1 // pred_fallthru
      _
    // Predicated region
    $region6: #{_lambda_.1} parent=1 // pred_check
      _
    $region7: #{_lambda_.1} parent=1 // pred_check_branch
      %20 = sbr.rel (0) target = $region9
    $region8: #{_lambda_.1} parent=1 // pred_region
      %s22 = ssub.s32 192, 192
      %23 = vsyncadd [#allocation3], %s22
      %s24 = sshll.u32 [#allocation2], 4
      %s25 = int_to_ptr.vmem [resolvable:$true] %s24
      %30 = dma.hbm_to_vmem [thread:$0]  %s1, 192, %s25, [#allocation3], 64, 64, 4
    $region9: #{_lambda_.1} parent=1 // pred_fallthru
      _
    // Predicated region
    $region10: #{_lambda_.1} parent=1 // pred_check
      _
    $region11: #{_lambda_.1} parent=1 // pred_check_branch
      %32 = sbr.rel (0) target = $region13
    $region12: #{_lambda_.1} parent=1 // pred_region
      %s34 = ssub.s32 640, 640
      %35 = vsyncadd [#allocation5], %s34
      %s36 = sshll.u32 [#allocation4], 4
      %s37 = int_to_ptr.vmem [resolvable:$true] %s36
      %42 = dma.hbm_to_vmem [thread:$0]  %s2, 640, %s37, [#allocation5], 128, 128, 8
    $region13: #{_lambda_.1} parent=1 // pred_fallthru
      _
    // Predicated region
    $region14: #{_lambda_.1} parent=1 // pred_check
      _
    $region15: #{_lambda_.1} parent=1 // pred_check_branch
      %44 = sbr.rel (0) target = $region17
    $region16: #{_lambda_.1} parent=1 // pred_region
      _
    $region17: #{_lambda_.1} parent=1 // pred_fallthru
      _
    // Predicated region
    $region18: #{_lambda_.1} parent=1 // pred_check
      _
    $region19: #{_lambda_.1} parent=1 // pred_check_branch
      %46 = sbr.rel (0) target = $region21
    $region20: #{_lambda_.1} parent=1 // pred_region
      %s48 = ssub.s32 640, 640
      %49 = vsyncadd [#allocation5], %s48
      %s50 = sshll.u32 [#allocation6], 4
      %s51 = int_to_ptr.vmem [resolvable:$true] %s50
      %56 = dma.hbm_to_vmem [thread:$0]  %s4, 640, %s51, [#allocation5], 128, 128, 8
    $region21: #{_lambda_.1} parent=1 // pred_fallthru
      _
    // Predicated region
    $region22: #{_lambda_.1} parent=1 // pred_check
      _
    $region23: #{_lambda_.1} parent=1 // pred_check_branch
      %58 = sbr.rel (0) target = $region25
    $region24: #{_lambda_.1} parent=1 // pred_region
      %s60 = ssub.s32 2048, 2048
      %61 = vsyncadd [#allocation8], %s60
      %s62 = sshll.u32 [#allocation7], 4
      %s63 = int_to_ptr.vmem [resolvable:$true] %s62
      %68 = dma.hbm_to_vmem [thread:$0]  %s5, 2048, %s63, [#allocation8], 64, 64, 4
    $region25: #{_lambda_.1} parent=1 // pred_fallthru
      _
    // Predicated region
    $region26: #{_lambda_.1} parent=1 // pred_check
      _
    $region27: #{_lambda_.1} parent=1 // pred_check_branch
      %70 = sbr.rel (0) target = $region29
    $region28: #{_lambda_.1} parent=1 // pred_region
      _
    $region29: #{_lambda_.1} parent=1 // pred_fallthru
      _
    // Predicated region
    $region30: #{_lambda_.1} parent=1 // pred_check
      _
    $region31: #{_lambda_.1} parent=1 // pred_check_branch
      %72 = sbr.rel (0) target = $region33
    $region32: #{_lambda_.1} parent=1 // pred_region
      %s74 = ssub.s32 512, 512
      %75 = vsyncadd [#allocation8], %s74
      %s76 = sshll.u32 [#allocation9], 4
      %s77 = int_to_ptr.vmem [resolvable:$true] %s76
      %82 = dma.hbm_to_vmem [thread:$0]  %s7, 512, %s77, [#allocation8], 64, 64, 4
    $region33: #{_lambda_.1} parent=1 // pred_fallthru
      _
    // Predicated region
    $region34: #{_lambda_.1} parent=1 // pred_check
      _
    $region35: #{_lambda_.1} parent=1 // pred_check_branch
      %84 = sbr.rel (0) target = $region37
    $region36: #{_lambda_.1} parent=1 // pred_region
      _
    $region37: #{_lambda_.1} parent=1 // pred_fallthru
      _
    // Predicated region
    $region38: #{_lambda_.1} parent=1 // pred_check
      _
    $region39: #{_lambda_.1} parent=1 // pred_check_branch
      %86 = sbr.rel (0) target = $region41
    $region40: #{_lambda_.1} parent=1 // pred_region
      %87 = dma.done [#allocation3], 192
    $region41: #{_lambda_.1} parent=1 // pred_fallthru
      _
    // Predicated region
    $region42: #{_lambda_.1} parent=1 // pred_check
      _
    $region43: #{_lambda_.1} parent=1 // pred_check_branch
      %89 = sbr.rel (0) target = $region45
    $region44: #{_lambda_.1} parent=1 // pred_region
      %90 = dma.done [#allocation5], 640
    $region45: #{_lambda_.1} parent=1 // pred_fallthru
      _
    // Predicated region
    $region46: #{_lambda_.1} parent=1 // pred_check
      _
    $region47: #{_lambda_.1} parent=1 // pred_check_branch
      %92 = sbr.rel (0) target = $region49
    $region48: #{_lambda_.1} parent=1 // pred_region
      %93 = dma.done [#allocation5], 640
    $region49: #{_lambda_.1} parent=1 // pred_fallthru
      _
    // Predicated region
    $region50: #{_lambda_.1} parent=1 // pred_check
      _
    $region51: #{_lambda_.1} parent=1 // pred_check_branch
      %95 = sbr.rel (0) target = $region53
    $region52: #{_lambda_.1} parent=1 // pred_region
      %96 = dma.done [#allocation8], 2048
    $region53: #{_lambda_.1} parent=1 // pred_fallthru
      _
    // Predicated region
    $region54: #{_lambda_.1} parent=1 // pred_check
      _
    $region55: #{_lambda_.1} parent=1 // pred_check_branch
      %98 = sbr.rel (0) target = $region57
    $region56: #{_lambda_.1} parent=1 // pred_region
      %99 = dma.done [#allocation8], 512
    $region57: #{_lambda_.1} parent=1 // pred_fallthru
      _
    %v101 = vld [vmem:[%s0] sm:$0x3]
    %v102 = vlaneseq
    %v103 = vand.u32 %v102, 127
    %v104 = vand.u32 %v103, 63
    %105 = vrot.lane.b32.xlu0 %v101, 1
    %v106 = vpop.permute.xlu0 %105
    %vm107 = vcmp.ge.s32.totalorder %v104, 1
    %vm108 = vcmp.lt.s32.totalorder %v104, 65
    %vm109 = vmand %vm107, %vm108
    %v110 = vsel %vm109, %v106, 0.0
    %v111 = vld [vmem:[#allocation2] sm:$0xf]
    %v112 = vpack.c.bf16 %v110, %v110
    %s113 = scalar_lea.vmem [#allocation2], 4
    %v114 = vld [vmem:[%s113] sm:$0xf]
    %v115 = vpack.c.bf16 %v101, %v101
    %vm116 = vcmask 15360
    %v118 = vsel %vm116, %v114, 0
    %vm120 = vcmask 1040384
    %v122 = vsel %vm120, %v115, 0
    %124 = vmatprep.subr.bf16.mxu0 0
    %125 = vmatpush1.bf16.msra.mxu0 0
    %126 = vmatprep.subr.bf16.mxu0 0
    %127 = vmatpush1.bf16.msra.mxu0 0
    %128 = vmatprep.subr.bf16.mxu0 0
    %129 = vmatpush1.bf16.msra.mxu0 0
    %130 = vmatprep.subr.bf16.mxu0 0
    %131 = vmatpush1.bf16.msra.mxu0 0
    %132 = vmatprep.subr.bf16.mxu0 0
    %133 = vmatpush1.bf16.msra.mxu0 0
    %134 = vmatprep.subr.bf16.mxu0 0
    %135 = vmatpush1.bf16.msra.mxu0 0
    %136 = vmatprep.subr.bf16.mxu0 0
    %137 = vmatpush1.bf16.msra.mxu0 0
    %138 = vmatprep.subr.bf16.mxu0 0
    %139 = vmatpush1.bf16.msra.mxu0 %v122
    %140 = vmatprep.subr.bf16.mxu0 0
    %141 = vmatpush2.bf16.msra.mxu0 0
    %142 = vmatprep.subr.bf16.mxu0 0
    %143 = vmatpush2.bf16.msra.mxu0 0
    %144 = vmatprep.subr.bf16.mxu0 0
    %145 = vmatpush2.bf16.msra.mxu0 0
    %146 = vmatprep.subr.bf16.mxu0 0
    %147 = vmatpush2.bf16.msra.mxu0 0
    %148 = vmatprep.subr.bf16.mxu0 0
    %149 = vmatpush2.bf16.msra.mxu0 0
    %150 = vmatprep.subr.bf16.mxu0 0
    %151 = vmatpush2.bf16.msra.mxu0 0
    %152 = vmatprep.subr.bf16.mxu0 0
    %153 = vmatpush2.bf16.msra.mxu0 0
    %154 = vmatprep.subr.bf16.mxu0 0
    %155 = vmatpush2.bf16.msra.mxu0 0
    %156 = vmatprep.mubr.bf16.mxu0 0
    %157 = vmatmul.mubr.bf16.gmra.mxu0 %v118
    %v158 = vpop.f32.mrf.mxu0
    %v159 = vadd.f32 0.0, %v158
    %v160 = vpop.f32.mrf.mxu0
    %v161 = vpop.f32.mrf.mxu0
    %v162 = vpop.f32.mrf.mxu0
    %163 = vdwg.mxu0
    %v165 = vsel %vm116, %v111, 0
    %v168 = vsel %vm120, %v112, 0
    %170 = vmatprep.subr.bf16.mxu0 0
    %171 = vmatpush1.bf16.msra.mxu0 0
    %172 = vmatprep.subr.bf16.mxu0 0
    %173 = vmatpush1.bf16.msra.mxu0 0
    %174 = vmatprep.subr.bf16.mxu0 0
    %175 = vmatpush1.bf16.msra.mxu0 0
    %176 = vmatprep.subr.bf16.mxu0 0
    %177 = vmatpush1.bf16.msra.mxu0 0
    %178 = vmatprep.subr.bf16.mxu0 0
    %179 = vmatpush1.bf16.msra.mxu0 0
    %180 = vmatprep.subr.bf16.mxu0 0
    %181 = vmatpush1.bf16.msra.mxu0 0
    %182 = vmatprep.subr.bf16.mxu0 0
    %183 = vmatpush1.bf16.msra.mxu0 0
    %184 = vmatprep.subr.bf16.mxu0 0
    %185 = vmatpush1.bf16.msra.mxu0 %v168
    %186 = vmatprep.subr.bf16.mxu0 0
    %187 = vmatpush2.bf16.msra.mxu0 0
    %188 = vmatprep.subr.bf16.mxu0 0
    %189 = vmatpush2.bf16.msra.mxu0 0
    %190 = vmatprep.subr.bf16.mxu0 0
    %191 = vmatpush2.bf16.msra.mxu0 0
    %192 = vmatprep.subr.bf16.mxu0 0
    %193 = vmatpush2.bf16.msra.mxu0 0
    %194 = vmatprep.subr.bf16.mxu0 0
    %195 = vmatpush2.bf16.msra.mxu0 0
    %196 = vmatprep.subr.bf16.mxu0 0
    %197 = vmatpush2.bf16.msra.mxu0 0
    %198 = vmatprep.subr.bf16.mxu0 0
    %199 = vmatpush2.bf16.msra.mxu0 0
    %200 = vmatprep.subr.bf16.mxu0 0
    %201 = vmatpush2.bf16.msra.mxu0 0
    %202 = vmatprep.mubr.bf16.mxu0 0
    %203 = vmatmul.mubr.bf16.gmra.mxu0 %v165
    %v204 = vpop.f32.mrf.mxu0
    %v205 = vadd.f32 %v159, %v204
    %v206 = vpop.f32.mrf.mxu0
    %v207 = vpop.f32.mrf.mxu0
    %v208 = vpop.f32.mrf.mxu0
    %209 = vdwg.mxu0
    %210 = vrot.lane.b32.xlu0 %v101, 127
    %v211 = vpop.permute.xlu0 %210
    %vm212 = vcmp.ge.s32.totalorder %v104, 4294967295
    %vm213 = vcmp.lt.s32.totalorder %v104, 63
    %vm214 = vmand %vm212, %vm213
    %v215 = vsel %vm214, %v211, 0.0
    %s216 = scalar_lea.vmem [#allocation2], 8
    %v217 = vld [vmem:[%s216] sm:$0xf]
    %v218 = vpack.c.bf16 %v215, %v215
    %v220 = vsel %vm116, %v217, 0
    %v223 = vsel %vm120, %v218, 0
    %225 = vmatprep.subr.bf16.mxu0 0
    %226 = vmatpush1.bf16.msra.mxu0 0
    %227 = vmatprep.subr.bf16.mxu0 0
    %228 = vmatpush1.bf16.msra.mxu0 0
    %229 = vmatprep.subr.bf16.mxu0 0
    %230 = vmatpush1.bf16.msra.mxu0 0
    %231 = vmatprep.subr.bf16.mxu0 0
    %232 = vmatpush1.bf16.msra.mxu0 0
    %233 = vmatprep.subr.bf16.mxu0 0
    %234 = vmatpush1.bf16.msra.mxu0 0
    %235 = vmatprep.subr.bf16.mxu0 0
    %236 = vmatpush1.bf16.msra.mxu0 0
    %237 = vmatprep.subr.bf16.mxu0 0
    %238 = vmatpush1.bf16.msra.mxu0 0
    %239 = vmatprep.subr.bf16.mxu0 0
    %240 = vmatpush1.bf16.msra.mxu0 %v223
    %241 = vmatprep.subr.bf16.mxu0 0
    %242 = vmatpush2.bf16.msra.mxu0 0
    %243 = vmatprep.subr.bf16.mxu0 0
    %244 = vmatpush2.bf16.msra.mxu0 0
    %245 = vmatprep.subr.bf16.mxu0 0
    %246 = vmatpush2.bf16.msra.mxu0 0
    %247 = vmatprep.subr.bf16.mxu0 0
    %248 = vmatpush2.bf16.msra.mxu0 0
    %249 = vmatprep.subr.bf16.mxu0 0
    %250 = vmatpush2.bf16.msra.mxu0 0
    %251 = vmatprep.subr.bf16.mxu0 0
    %252 = vmatpush2.bf16.msra.mxu0 0
    %253 = vmatprep.subr.bf16.mxu0 0
    %254 = vmatpush2.bf16.msra.mxu0 0
    %255 = vmatprep.subr.bf16.mxu0 0
    %256 = vmatpush2.bf16.msra.mxu0 0
    %257 = vmatprep.mubr.bf16.mxu0 0
    %258 = vmatmul.mubr.bf16.gmra.mxu0 %v220
    %v259 = vpop.f32.mrf.mxu0
    %v260 = vadd.f32 0.0, %v259
    %v261 = vpop.f32.mrf.mxu0
    %v262 = vpop.f32.mrf.mxu0
    %v263 = vpop.f32.mrf.mxu0
    %264 = vdwg.mxu0
    %v265 = vadd.f32 %v205, %v260
    %v266 = vld [vmem:[#allocation4] sm:$0xff]
    %s267 = scalar_lea.vmem [#allocation4], 8
    %v268 = vld [vmem:[%s267] sm:$0xff]
    %s269 = scalar_lea.vmem [#allocation4], 16
    %v270 = vld [vmem:[%s269] sm:$0xff]
    %s271 = scalar_lea.vmem [#allocation4], 24
    %v272 = vld [vmem:[%s271] sm:$0xff]
    %s273 = scalar_lea.vmem [#allocation4], 32
    %v274 = vld [vmem:[%s273] sm:$0xff]
    %276 = vset.pattern.permute.xlu0 0
    %277 = vperm.xlu0 %276, %v266
    %v278 = vpop.permute.xlu0 %277
    %v280 = vadd.f32 %v265, %v278
    %v281 = vmax.f32 %v280, 0.0
    %283 = vset.pattern.permute.xlu0 0
    %284 = vperm.xlu0 %283, %v268
    %v285 = vpop.permute.xlu0 %284
    %v287 = vmul.f32 %v281, %v285
    %289 = vset.pattern.permute.xlu0 0
    %290 = vperm.xlu0 %289, %v270
    %v291 = vpop.permute.xlu0 %290
    %v293 = vadd.f32 %v287, %v291
    %v294 = vmax.f32 %v293, 0.0
    %295 = vrot.lane.b32.xlu0 %v294, 127
    %v296 = vpop.permute.xlu0 %295
    %v297 = vmax.f32 %v294, %v296
    %v298 = vlaneseq
    %v299 = vshrl.u32 %v298, 7
    %v300 = vadd.s32 %v299, 8
    %v301 = vadd.s32 %v299, 16
    %v302 = vadd.s32 %v299, 24
    %v303 = vadd.s32 %v299, 32
    %v304 = vadd.s32 %v299, 40
    %v305 = vadd.s32 %v299, 48
    %v306 = vadd.s32 %v299, 56
    %v307 = vadd.s32 %v299, 64
    %v308 = vadd.s32 %v299, 72
    %v309 = vadd.s32 %v299, 80
    %v310 = vadd.s32 %v299, 88
    %v311 = vadd.s32 %v299, 96
    %v312 = vadd.s32 %v299, 104
    %v313 = vadd.s32 %v299, 112
    %v314 = vadd.s32 %v299, 120
    %v315 = vmul.u32 %v103, 2
    %vm316 = vcmp.eq.s32.totalorder %v299, %v315
    %vm317 = vcmp.eq.s32.totalorder %v300, %v315
    %vm318 = vcmp.eq.s32.totalorder %v301, %v315
    %vm319 = vcmp.eq.s32.totalorder %v302, %v315
    %vm320 = vcmp.eq.s32.totalorder %v303, %v315
    %vm321 = vcmp.eq.s32.totalorder %v304, %v315
    %vm322 = vcmp.eq.s32.totalorder %v305, %v315
    %vm323 = vcmp.eq.s32.totalorder %v306, %v315
    %vm324 = vcmp.eq.s32.totalorder %v307, %v315
    %vm325 = vcmp.eq.s32.totalorder %v308, %v315
    %vm326 = vcmp.eq.s32.totalorder %v309, %v315
    %vm327 = vcmp.eq.s32.totalorder %v310, %v315
    %vm328 = vcmp.eq.s32.totalorder %v311, %v315
    %vm329 = vcmp.eq.s32.totalorder %v312, %v315
    %vm330 = vcmp.eq.s32.totalorder %v313, %v315
    %vm331 = vcmp.eq.s32.totalorder %v314, %v315
    %v332 = vsel %vm316, 1, 0
    %v333 = vsel %vm317, 1, 0
    %v334 = vsel %vm318, 1, 0
    %v335 = vsel %vm319, 1, 0
    %v336 = vsel %vm320, 1, 0
    %v337 = vsel %vm321, 1, 0
    %v338 = vsel %vm322, 1, 0
    %v339 = vsel %vm323, 1, 0
    %v340 = vsel %vm324, 1, 0
    %v341 = vsel %vm325, 1, 0
    %v342 = vsel %vm326, 1, 0
    %v343 = vsel %vm327, 1, 0
    %v344 = vsel %vm328, 1, 0
    %v345 = vsel %vm329, 1, 0
    %v346 = vsel %vm330, 1, 0
    %v347 = vsel %vm331, 1, 0
    %v348 = vcvt.s32.f32 %v332
    %v349 = vcvt.s32.f32 %v333
    %v350 = vcvt.s32.f32 %v334
    %v351 = vcvt.s32.f32 %v335
    %v352 = vcvt.s32.f32 %v336
    %v353 = vcvt.s32.f32 %v337
    %v354 = vcvt.s32.f32 %v338
    %v355 = vcvt.s32.f32 %v339
    %v356 = vcvt.s32.f32 %v340
    %v357 = vcvt.s32.f32 %v341
    %v358 = vcvt.s32.f32 %v342
    %v359 = vcvt.s32.f32 %v343
    %v360 = vcvt.s32.f32 %v344
    %v361 = vcvt.s32.f32 %v345
    %v362 = vcvt.s32.f32 %v346
    %v363 = vcvt.s32.f32 %v347
    %364 = vmatprep.subr.mxu0 0.0
    %365 = vmatpush1.msra.mxu0 %v363
    %366 = vmatprep.subr.mxu0 0.0
    %367 = vmatpush1.msra.mxu0 %v362
    %368 = vmatprep.subr.mxu0 0.0
    %369 = vmatpush1.msra.mxu0 %v361
    %370 = vmatprep.subr.mxu0 0.0
    %371 = vmatpush1.msra.mxu0 %v360
    %372 = vmatprep.subr.mxu0 0.0
    %373 = vmatpush1.msra.mxu0 %v359
    %374 = vmatprep.subr.mxu0 0.0
    %375 = vmatpush1.msra.mxu0 %v358
    %376 = vmatprep.subr.mxu0 0.0
    %377 = vmatpush1.msra.mxu0 %v357
    %378 = vmatprep.subr.mxu0 0.0
    %379 = vmatpush1.msra.mxu0 %v356
    %380 = vmatprep.subr.mxu0 0.0
    %381 = vmatpush1.msra.mxu0 %v355
    %382 = vmatprep.subr.mxu0 0.0
    %383 = vmatpush1.msra.mxu0 %v354
    %384 = vmatprep.subr.mxu0 0.0
    %385 = vmatpush1.msra.mxu0 %v353
    %386 = vmatprep.subr.mxu0 0.0
    %387 = vmatpush1.msra.mxu0 %v352
    %388 = vmatprep.subr.mxu0 0.0
    %389 = vmatpush1.msra.mxu0 %v351
    %390 = vmatprep.subr.mxu0 0.0
    %391 = vmatpush1.msra.mxu0 %v350
    %392 = vmatprep.subr.mxu0 0.0
    %393 = vmatpush1.msra.mxu0 %v349
    %394 = vmatprep.subr.mxu0 0.0
    %395 = vmatpush1.msra.mxu0 %v348
    %396 = vmatprep.subr.mxu0 0.0
    %397 = vmatpush2.msra.mxu0 0.0
    %398 = vmatprep.subr.mxu0 0.0
    %399 = vmatpush2.msra.mxu0 0.0
    %400 = vmatprep.subr.mxu0 0.0
    %401 = vmatpush2.msra.mxu0 0.0
    %402 = vmatprep.subr.mxu0 0.0
    %403 = vmatpush2.msra.mxu0 0.0
    %404 = vmatprep.subr.mxu0 0.0
    %405 = vmatpush2.msra.mxu0 0.0
    %406 = vmatprep.subr.mxu0 0.0
    %407 = vmatpush2.msra.mxu0 0.0
    %408 = vmatprep.subr.mxu0 0.0
    %409 = vmatpush2.msra.mxu0 0.0
    %410 = vmatprep.subr.mxu0 0.0
    %411 = vmatpush2.msra.mxu0 0.0
    %412 = vmatprep.subr.mxu0 0.0
    %413 = vmatpush2.msra.mxu0 0.0
    %414 = vmatprep.subr.mxu0 0.0
    %415 = vmatpush2.msra.mxu0 0.0
    %416 = vmatprep.subr.mxu0 0.0
    %417 = vmatpush2.msra.mxu0 0.0
    %418 = vmatprep.subr.mxu0 0.0
    %419 = vmatpush2.msra.mxu0 0.0
    %420 = vmatprep.subr.mxu0 0.0
    %421 = vmatpush2.msra.mxu0 0.0
    %422 = vmatprep.subr.mxu0 0.0
    %423 = vmatpush2.msra.mxu0 0.0
    %424 = vmatprep.subr.mxu0 0.0
    %425 = vmatpush2.msra.mxu0 0.0
    %426 = vmatprep.subr.mxu0 0.0
    %427 = vmatpush2.msra.mxu0 0.0
    %428 = vmatprep.mubr.f32.mxu0 0.0
    %429 = vmatmul.mubr.f32.gmra.mxu0 %v297
    %v430 = vpop.f32.mrf.mxu0
    %v431 = vadd.f32 0.0, %v430
    %v432 = vpop.f32.mrf.mxu0
    %433 = vdwg.mxu0
    %435 = vset.pattern.permute.xlu0 0
    %436 = vperm.xlu0 %435, %v272
    %v437 = vpop.permute.xlu0 %436
    %v439 = vmul.f32 %v431, %v437
    %441 = vset.pattern.permute.xlu0 0
    %442 = vperm.xlu0 %441, %v274
    %v443 = vpop.permute.xlu0 %442
    %v445 = vadd.f32 %v439, %v443
    %v446 = vand.u32 %v103, 31
    %vm447 = vcmask 1048064
    %448 = vrot.lane.b32.xlu0 %v445, 64
    %v449 = vpop.permute.xlu0 %448
    %v450 = vsel %vm447, %v449, %v445
    %451 = vrot.lane.b32.xlu0 %v450, 64
    %v452 = vpop.permute.xlu0 %451
    %v453 = vsel %vm447, %v452, %v445
    %vm454 = vcmp.ge.s32.totalorder %v446, 1
    %vm455 = vcmp.lt.s32.totalorder %v446, 33
    %vm456 = vmand %vm454, %vm455
    %458 = vrot.lane.b32.xlu0 %v453, 65
    %v459 = vpop.permute.xlu0 %458
    %v461 = vsel %vm456, %v459, 0.0
    %v462 = vld [vmem:[%s3] sm:$0xf]
    %v463 = vpack.c.bf16 %v461, %v461
    %s464 = scalar_lea.vmem %s3, 4
    %v465 = vld [vmem:[%s464] sm:$0xf]
    %v466 = vpack.c.bf16 %v445, %v445
    %vm467 = vcmask 64512
    %v469 = vsel %vm467, %v465, 0
    %vm471 = vcmask 1043456
    %v473 = vsel %vm471, %v466, 0
    %475 = vmatprep.subr.bf16.mxu0 0
    %476 = vmatpush1.bf16.msra.mxu0 0
    %477 = vmatprep.subr.bf16.mxu0 0
    %478 = vmatpush1.bf16.msra.mxu0 0
    %479 = vmatprep.subr.bf16.mxu0 0
    %480 = vmatpush1.bf16.msra.mxu0 0
    %481 = vmatprep.subr.bf16.mxu0 0
    %482 = vmatpush1.bf16.msra.mxu0 0
    %483 = vmatprep.subr.bf16.mxu0 0
    %484 = vmatpush1.bf16.msra.mxu0 0
    %485 = vmatprep.subr.bf16.mxu0 0
    %486 = vmatpush1.bf16.msra.mxu0 0
    %487 = vmatprep.subr.bf16.mxu0 0
    %488 = vmatpush1.bf16.msra.mxu0 0
    %489 = vmatprep.subr.bf16.mxu0 0
    %490 = vmatpush1.bf16.msra.mxu0 %v473
    %491 = vmatprep.subr.bf16.mxu0 0
    %492 = vmatpush2.bf16.msra.mxu0 0
    %493 = vmatprep.subr.bf16.mxu0 0
    %494 = vmatpush2.bf16.msra.mxu0 0
    %495 = vmatprep.subr.bf16.mxu0 0
    %496 = vmatpush2.bf16.msra.mxu0 0
    %497 = vmatprep.subr.bf16.mxu0 0
    %498 = vmatpush2.bf16.msra.mxu0 0
    %499 = vmatprep.subr.bf16.mxu0 0
    %500 = vmatpush2.bf16.msra.mxu0 0
    %501 = vmatprep.subr.bf16.mxu0 0
    %502 = vmatpush2.bf16.msra.mxu0 0
    %503 = vmatprep.subr.bf16.mxu0 0
    %504 = vmatpush2.bf16.msra.mxu0 0
    %505 = vmatprep.subr.bf16.mxu0 0
    %506 = vmatpush2.bf16.msra.mxu0 0
    %507 = vmatprep.mubr.bf16.mxu0 0
    %508 = vmatmul.mubr.bf16.gmra.mxu0 %v469
    %v509 = vpop.f32.mrf.mxu0
    %v510 = vadd.f32 0.0, %v509
    %v511 = vpop.f32.mrf.mxu0
    %v512 = vpop.f32.mrf.mxu0
    %v513 = vpop.f32.mrf.mxu0
    %514 = vdwg.mxu0
    %v516 = vsel %vm467, %v462, 0
    %v519 = vsel %vm471, %v463, 0
    %521 = vmatprep.subr.bf16.mxu0 0
    %522 = vmatpush1.bf16.msra.mxu0 0
    %523 = vmatprep.subr.bf16.mxu0 0
    %524 = vmatpush1.bf16.msra.mxu0 0
    %525 = vmatprep.subr.bf16.mxu0 0
    %526 = vmatpush1.bf16.msra.mxu0 0
    %527 = vmatprep.subr.bf16.mxu0 0
    %528 = vmatpush1.bf16.msra.mxu0 0
    %529 = vmatprep.subr.bf16.mxu0 0
    %530 = vmatpush1.bf16.msra.mxu0 0
    %531 = vmatprep.subr.bf16.mxu0 0
    %532 = vmatpush1.bf16.msra.mxu0 0
    %533 = vmatprep.subr.bf16.mxu0 0
    %534 = vmatpush1.bf16.msra.mxu0 0
    %535 = vmatprep.subr.bf16.mxu0 0
    %536 = vmatpush1.bf16.msra.mxu0 %v519
    %537 = vmatprep.subr.bf16.mxu0 0
    %538 = vmatpush2.bf16.msra.mxu0 0
    %539 = vmatprep.subr.bf16.mxu0 0
    %540 = vmatpush2.bf16.msra.mxu0 0
    %541 = vmatprep.subr.bf16.mxu0 0
    %542 = vmatpush2.bf16.msra.mxu0 0
    %543 = vmatprep.subr.bf16.mxu0 0
    %544 = vmatpush2.bf16.msra.mxu0 0
    %545 = vmatprep.subr.bf16.mxu0 0
    %546 = vmatpush2.bf16.msra.mxu0 0
    %547 = vmatprep.subr.bf16.mxu0 0
    %548 = vmatpush2.bf16.msra.mxu0 0
    %549 = vmatprep.subr.bf16.mxu0 0
    %550 = vmatpush2.bf16.msra.mxu0 0
    %551 = vmatprep.subr.bf16.mxu0 0
    %552 = vmatpush2.bf16.msra.mxu0 0
    %553 = vmatprep.mubr.bf16.mxu0 0
    %554 = vmatmul.mubr.bf16.gmra.mxu0 %v516
    %v555 = vpop.f32.mrf.mxu0
    %v556 = vadd.f32 %v510, %v555
    %v557 = vpop.f32.mrf.mxu0
    %v558 = vpop.f32.mrf.mxu0
    %v559 = vpop.f32.mrf.mxu0
    %560 = vdwg.mxu0
    %vm561 = vcmp.ge.s32.totalorder %v446, 4294967295
    %vm562 = vcmp.lt.s32.totalorder %v446, 31
    %vm563 = vmand %vm561, %vm562
    %564 = vrot.lane.b32.xlu0 %v453, 127
    %v565 = vpop.permute.xlu0 %564
    %v567 = vsel %vm563, %v565, 0.0
    %s568 = scalar_lea.vmem %s3, 8
    %v569 = vld [vmem:[%s568] sm:$0xf]
    %v570 = vpack.c.bf16 %v567, %v567
    %v572 = vsel %vm467, %v569, 0
    %v575 = vsel %vm471, %v570, 0
    %577 = vmatprep.subr.bf16.mxu0 0
    %578 = vmatpush1.bf16.msra.mxu0 0
    %579 = vmatprep.subr.bf16.mxu0 0
    %580 = vmatpush1.bf16.msra.mxu0 0
    %581 = vmatprep.subr.bf16.mxu0 0
    %582 = vmatpush1.bf16.msra.mxu0 0
    %583 = vmatprep.subr.bf16.mxu0 0
    %584 = vmatpush1.bf16.msra.mxu0 0
    %585 = vmatprep.subr.bf16.mxu0 0
    %586 = vmatpush1.bf16.msra.mxu0 0
    %587 = vmatprep.subr.bf16.mxu0 0
    %588 = vmatpush1.bf16.msra.mxu0 0
    %589 = vmatprep.subr.bf16.mxu0 0
    %590 = vmatpush1.bf16.msra.mxu0 0
    %591 = vmatprep.subr.bf16.mxu0 0
    %592 = vmatpush1.bf16.msra.mxu0 %v575
    %593 = vmatprep.subr.bf16.mxu0 0
    %594 = vmatpush2.bf16.msra.mxu0 0
    %595 = vmatprep.subr.bf16.mxu0 0
    %596 = vmatpush2.bf16.msra.mxu0 0
    %597 = vmatprep.subr.bf16.mxu0 0
    %598 = vmatpush2.bf16.msra.mxu0 0
    %599 = vmatprep.subr.bf16.mxu0 0
    %600 = vmatpush2.bf16.msra.mxu0 0
    %601 = vmatprep.subr.bf16.mxu0 0
    %602 = vmatpush2.bf16.msra.mxu0 0
    %603 = vmatprep.subr.bf16.mxu0 0
    %604 = vmatpush2.bf16.msra.mxu0 0
    %605 = vmatprep.subr.bf16.mxu0 0
    %606 = vmatpush2.bf16.msra.mxu0 0
    %607 = vmatprep.subr.bf16.mxu0 0
    %608 = vmatpush2.bf16.msra.mxu0 0
    %609 = vmatprep.mubr.bf16.mxu0 0
    %610 = vmatmul.mubr.bf16.gmra.mxu0 %v572
    %v611 = vpop.f32.mrf.mxu0
    %v612 = vadd.f32 0.0, %v611
    %v613 = vpop.f32.mrf.mxu0
    %v614 = vpop.f32.mrf.mxu0
    %v615 = vpop.f32.mrf.mxu0
    %616 = vdwg.mxu0
    %v617 = vadd.f32 %v556, %v612
    %v618 = vld [vmem:[#allocation6] sm:$0xff]
    %s619 = scalar_lea.vmem [#allocation6], 8
    %v620 = vld [vmem:[%s619] sm:$0xff]
    %s621 = scalar_lea.vmem [#allocation6], 16
    %v622 = vld [vmem:[%s621] sm:$0xff]
    %s623 = scalar_lea.vmem [#allocation6], 24
    %v624 = vld [vmem:[%s623] sm:$0xff]
    %s625 = scalar_lea.vmem [#allocation6], 32
    %v626 = vld [vmem:[%s625] sm:$0xff]
    %628 = vset.pattern.permute.xlu0 0
    %629 = vperm.xlu0 %628, %v618
    %v630 = vpop.permute.xlu0 %629
    %v632 = vadd.f32 %v617, %v630
    %v633 = vmax.f32 %v632, 0.0
    %635 = vset.pattern.permute.xlu0 0
    %636 = vperm.xlu0 %635, %v620
    %v637 = vpop.permute.xlu0 %636
    %v639 = vmul.f32 %v633, %v637
    %641 = vset.pattern.permute.xlu0 0
    %642 = vperm.xlu0 %641, %v622
    %v643 = vpop.permute.xlu0 %642
    %v645 = vadd.f32 %v639, %v643
    %v646 = vmax.f32 %v645, 0.0
    %647 = vrot.lane.b32.xlu0 %v646, 64
    %v648 = vpop.permute.xlu0 %647
    %v649 = vsel %vm447, %v648, %v646
    %650 = vrot.lane.b32.xlu0 %v649, 64
    %v651 = vpop.permute.xlu0 %650
    %v652 = vsel %vm447, %v651, %v646
    %654 = vrot.lane.b32.xlu0 %v652, 127
    %v655 = vpop.permute.xlu0 %654
    %v657 = vmax.f32 %v646, %v655
    %vm658 = vcmask 523264
    %v660 = vsel %vm658, %v657, 0
    %662 = vmatprep.subr.mxu0 0.0
    %663 = vmatpush1.msra.mxu0 0.0
    %664 = vmatprep.subr.mxu0 0.0
    %665 = vmatpush1.msra.mxu0 0.0
    %666 = vmatprep.subr.mxu0 0.0
    %667 = vmatpush1.msra.mxu0 0.0
    %668 = vmatprep.subr.mxu0 0.0
    %669 = vmatpush1.msra.mxu0 0.0
    %670 = vmatprep.subr.mxu0 0.0
    %671 = vmatpush1.msra.mxu0 0.0
    %672 = vmatprep.subr.mxu0 0.0
    %673 = vmatpush1.msra.mxu0 0.0
    %674 = vmatprep.subr.mxu0 0.0
    %675 = vmatpush1.msra.mxu0 0.0
    %676 = vmatprep.subr.mxu0 0.0
    %677 = vmatpush1.msra.mxu0 0.0
    %678 = vmatprep.subr.mxu0 0.0
    %679 = vmatpush1.msra.mxu0 %v355
    %680 = vmatprep.subr.mxu0 0.0
    %681 = vmatpush1.msra.mxu0 %v354
    %682 = vmatprep.subr.mxu0 0.0
    %683 = vmatpush1.msra.mxu0 %v353
    %684 = vmatprep.subr.mxu0 0.0
    %685 = vmatpush1.msra.mxu0 %v352
    %686 = vmatprep.subr.mxu0 0.0
    %687 = vmatpush1.msra.mxu0 %v351
    %688 = vmatprep.subr.mxu0 0.0
    %689 = vmatpush1.msra.mxu0 %v350
    %690 = vmatprep.subr.mxu0 0.0
    %691 = vmatpush1.msra.mxu0 %v349
    %692 = vmatprep.subr.mxu0 0.0
    %693 = vmatpush1.msra.mxu0 %v348
    %694 = vmatprep.subr.mxu0 0.0
    %695 = vmatpush2.msra.mxu0 0.0
    %696 = vmatprep.subr.mxu0 0.0
    %697 = vmatpush2.msra.mxu0 0.0
    %698 = vmatprep.subr.mxu0 0.0
    %699 = vmatpush2.msra.mxu0 0.0
    %700 = vmatprep.subr.mxu0 0.0
    %701 = vmatpush2.msra.mxu0 0.0
    %702 = vmatprep.subr.mxu0 0.0
    %703 = vmatpush2.msra.mxu0 0.0
    %704 = vmatprep.subr.mxu0 0.0
    %705 = vmatpush2.msra.mxu0 0.0
    %706 = vmatprep.subr.mxu0 0.0
    %707 = vmatpush2.msra.mxu0 0.0
    %708 = vmatprep.subr.mxu0 0.0
    %709 = vmatpush2.msra.mxu0 0.0
    %710 = vmatprep.subr.mxu0 0.0
    %711 = vmatpush2.msra.mxu0 0.0
    %712 = vmatprep.subr.mxu0 0.0
    %713 = vmatpush2.msra.mxu0 0.0
    %714 = vmatprep.subr.mxu0 0.0
    %715 = vmatpush2.msra.mxu0 0.0
    %716 = vmatprep.subr.mxu0 0.0
    %717 = vmatpush2.msra.mxu0 0.0
    %718 = vmatprep.subr.mxu0 0.0
    %719 = vmatpush2.msra.mxu0 0.0
    %720 = vmatprep.subr.mxu0 0.0
    %721 = vmatpush2.msra.mxu0 0.0
    %722 = vmatprep.subr.mxu0 0.0
    %723 = vmatpush2.msra.mxu0 0.0
    %724 = vmatprep.subr.mxu0 0.0
    %725 = vmatpush2.msra.mxu0 0.0
    %726 = vmatprep.mubr.f32.mxu0 0.0
    %727 = vmatmul.mubr.f32.gmra.mxu0 %v660
    %v728 = vpop.f32.mrf.mxu0
    %v729 = vadd.f32 0.0, %v728
    %v730 = vpop.f32.mrf.mxu0
    %731 = vdwg.mxu0
    %733 = vset.pattern.permute.xlu0 0
    %734 = vperm.xlu0 %733, %v624
    %v735 = vpop.permute.xlu0 %734
    %v737 = vmul.f32 %v729, %v735
    %739 = vset.pattern.permute.xlu0 0
    %740 = vperm.xlu0 %739, %v626
    %v741 = vpop.permute.xlu0 %740
    %v743 = vadd.f32 %v737, %v741
    %v744 = vpack.c.bf16 %v743, %v743
    %v745 = vld [vmem:[#allocation7] sm:$0xf]
    %v746 = vld [vmem:[#allocation7 + $0x4] sm:$0xf]
    %v747 = vld [vmem:[#allocation7 + $0x8] sm:$0xf]
    %v748 = vld [vmem:[#allocation7 + $0xc] sm:$0xf]
    %s749 = scalar_lea.vmem [#allocation7], 16
    %v750 = vld [vmem:[%s749] sm:$0xf]
    %v751 = vld [vmem:[%s749 + $0x4] sm:$0xf]
    %v752 = vld [vmem:[%s749 + $0x8] sm:$0xf]
    %v753 = vld [vmem:[%s749 + $0xc] sm:$0xf]
    %v755 = vshrl.u32 %v744, 16
    %v761 = vunpack.c.l.b16 %v750
    %v762 = vunpack.c.l.b16 %v751
    %v763 = vunpack.c.l.b16 %v752
    %v764 = vunpack.c.l.b16 %v753
    %v765 = vpack.c.b16 %v762, %v761
    %v766 = vpack.c.b16 %v764, %v763
    %vm769 = vcmask 261120
    %v771 = vsel %vm769, %v755, 0
    %773 = vmatprep.subr.bf16.mxu0 0
    %774 = vmatpush1.bf16.msra.mxu0 0
    %775 = vmatprep.subr.bf16.mxu0 0
    %776 = vmatpush1.bf16.msra.mxu0 0
    %777 = vmatprep.subr.bf16.mxu0 0
    %778 = vmatpush1.bf16.msra.mxu0 0
    %779 = vmatprep.subr.bf16.mxu0 0
    %780 = vmatpush1.bf16.msra.mxu0 0
    %781 = vmatprep.subr.bf16.mxu0 0
    %782 = vmatpush1.bf16.msra.mxu0 0
    %783 = vmatprep.subr.bf16.mxu0 0
    %784 = vmatpush1.bf16.msra.mxu0 0
    %785 = vmatprep.subr.bf16.mxu0 0
    %786 = vmatpush1.bf16.msra.mxu0 %v766
    %787 = vmatprep.subr.bf16.mxu0 0
    %788 = vmatpush1.bf16.msra.mxu0 %v765
    %789 = vmatprep.subr.bf16.mxu0 0
    %790 = vmatpush2.bf16.msra.mxu0 0
    %791 = vmatprep.subr.bf16.mxu0 0
    %792 = vmatpush2.bf16.msra.mxu0 0
    %793 = vmatprep.subr.bf16.mxu0 0
    %794 = vmatpush2.bf16.msra.mxu0 0
    %795 = vmatprep.subr.bf16.mxu0 0
    %796 = vmatpush2.bf16.msra.mxu0 0
    %797 = vmatprep.subr.bf16.mxu0 0
    %798 = vmatpush2.bf16.msra.mxu0 0
    %799 = vmatprep.subr.bf16.mxu0 0
    %800 = vmatpush2.bf16.msra.mxu0 0
    %801 = vmatprep.subr.bf16.mxu0 0
    %802 = vmatpush2.bf16.msra.mxu0 0
    %803 = vmatprep.subr.bf16.mxu0 0
    %804 = vmatpush2.bf16.msra.mxu0 0
    %805 = vmatprep.mubr.bf16.mxu0 0
    %806 = vmatmul.mubr.bf16.gmra.mxu0 %v771
    %v807 = vpop.f32.mrf.mxu0
    %v808 = vadd.f32 0.0, %v807
    %v809 = vpop.f32.mrf.mxu0
    %v810 = vpop.f32.mrf.mxu0
    %v811 = vpop.f32.mrf.mxu0
    %812 = vdwg.mxu0
    %v817 = vunpack.c.l.b16 %v745
    %v818 = vunpack.c.l.b16 %v746
    %v819 = vunpack.c.l.b16 %v747
    %v820 = vunpack.c.l.b16 %v748
    %v821 = vpack.c.b16 %v818, %v817
    %v822 = vpack.c.b16 %v820, %v819
    %v825 = vsel %vm769, %v744, 0
    %827 = vmatprep.subr.bf16.mxu0 0
    %828 = vmatpush1.bf16.msra.mxu0 0
    %829 = vmatprep.subr.bf16.mxu0 0
    %830 = vmatpush1.bf16.msra.mxu0 0
    %831 = vmatprep.subr.bf16.mxu0 0
    %832 = vmatpush1.bf16.msra.mxu0 0
    %833 = vmatprep.subr.bf16.mxu0 0
    %834 = vmatpush1.bf16.msra.mxu0 0
    %835 = vmatprep.subr.bf16.mxu0 0
    %836 = vmatpush1.bf16.msra.mxu0 0
    %837 = vmatprep.subr.bf16.mxu0 0
    %838 = vmatpush1.bf16.msra.mxu0 0
    %839 = vmatprep.subr.bf16.mxu0 0
    %840 = vmatpush1.bf16.msra.mxu0 %v822
    %841 = vmatprep.subr.bf16.mxu0 0
    %842 = vmatpush1.bf16.msra.mxu0 %v821
    %843 = vmatprep.subr.bf16.mxu0 0
    %844 = vmatpush2.bf16.msra.mxu0 0
    %845 = vmatprep.subr.bf16.mxu0 0
    %846 = vmatpush2.bf16.msra.mxu0 0
    %847 = vmatprep.subr.bf16.mxu0 0
    %848 = vmatpush2.bf16.msra.mxu0 0
    %849 = vmatprep.subr.bf16.mxu0 0
    %850 = vmatpush2.bf16.msra.mxu0 0
    %851 = vmatprep.subr.bf16.mxu0 0
    %852 = vmatpush2.bf16.msra.mxu0 0
    %853 = vmatprep.subr.bf16.mxu0 0
    %854 = vmatpush2.bf16.msra.mxu0 0
    %855 = vmatprep.subr.bf16.mxu0 0
    %856 = vmatpush2.bf16.msra.mxu0 0
    %857 = vmatprep.subr.bf16.mxu0 0
    %858 = vmatpush2.bf16.msra.mxu0 0
    %859 = vmatprep.mubr.bf16.mxu0 0
    %860 = vmatmul.mubr.bf16.gmra.mxu0 %v825
    %v861 = vpop.f32.mrf.mxu0
    %v862 = vadd.f32 %v808, %v861
    %v863 = vpop.f32.mrf.mxu0
    %v864 = vpop.f32.mrf.mxu0
    %v865 = vpop.f32.mrf.mxu0
    %866 = vdwg.mxu0
    %s867 = scalar_lea.vmem [#allocation7], 32
    %v868 = vld [vmem:[%s867] sm:$0xf]
    %v869 = vld [vmem:[%s867 + $0x4] sm:$0xf]
    %v870 = vld [vmem:[%s867 + $0x8] sm:$0xf]
    %v871 = vld [vmem:[%s867 + $0xc] sm:$0xf]
    %v873 = vrot.slane %v744, 1
    %v878 = vunpack.c.l.b16 %v868
    %v879 = vunpack.c.l.b16 %v869
    %v880 = vunpack.c.l.b16 %v870
    %v881 = vunpack.c.l.b16 %v871
    %v882 = vpack.c.b16 %v879, %v878
    %v883 = vpack.c.b16 %v881, %v880
    %v887 = vsel %vm769, %v873, 0
    %889 = vmatprep.subr.bf16.mxu0 0
    %890 = vmatpush1.bf16.msra.mxu0 0
    %891 = vmatprep.subr.bf16.mxu0 0
    %892 = vmatpush1.bf16.msra.mxu0 0
    %893 = vmatprep.subr.bf16.mxu0 0
    %894 = vmatpush1.bf16.msra.mxu0 0
    %895 = vmatprep.subr.bf16.mxu0 0
    %896 = vmatpush1.bf16.msra.mxu0 0
    %897 = vmatprep.subr.bf16.mxu0 0
    %898 = vmatpush1.bf16.msra.mxu0 0
    %899 = vmatprep.subr.bf16.mxu0 0
    %900 = vmatpush1.bf16.msra.mxu0 0
    %901 = vmatprep.subr.bf16.mxu0 0
    %902 = vmatpush1.bf16.msra.mxu0 %v883
    %903 = vmatprep.subr.bf16.mxu0 0
    %904 = vmatpush1.bf16.msra.mxu0 %v882
    %905 = vmatprep.subr.bf16.mxu0 0
    %906 = vmatpush2.bf16.msra.mxu0 0
    %907 = vmatprep.subr.bf16.mxu0 0
    %908 = vmatpush2.bf16.msra.mxu0 0
    %909 = vmatprep.subr.bf16.mxu0 0
    %910 = vmatpush2.bf16.msra.mxu0 0
    %911 = vmatprep.subr.bf16.mxu0 0
    %912 = vmatpush2.bf16.msra.mxu0 0
    %913 = vmatprep.subr.bf16.mxu0 0
    %914 = vmatpush2.bf16.msra.mxu0 0
    %915 = vmatprep.subr.bf16.mxu0 0
    %916 = vmatpush2.bf16.msra.mxu0 0
    %917 = vmatprep.subr.bf16.mxu0 0
    %918 = vmatpush2.bf16.msra.mxu0 0
    %919 = vmatprep.subr.bf16.mxu0 0
    %920 = vmatpush2.bf16.msra.mxu0 0
    %921 = vmatprep.mubr.bf16.mxu0 0
    %922 = vmatmul.mubr.bf16.gmra.mxu0 %v887
    %v923 = vpop.f32.mrf.mxu0
    %v924 = vadd.f32 0.0, %v923
    %v925 = vpop.f32.mrf.mxu0
    %v926 = vpop.f32.mrf.mxu0
    %v927 = vpop.f32.mrf.mxu0
    %928 = vdwg.mxu0
    %v929 = vadd.f32 %v862, %v924
    %s930 = scalar_lea.vmem [#allocation7], 48
    %v931 = vld [vmem:[%s930] sm:$0xf]
    %v932 = vld [vmem:[%s930 + $0x4] sm:$0xf]
    %v933 = vld [vmem:[%s930 + $0x8] sm:$0xf]
    %v934 = vld [vmem:[%s930 + $0xc] sm:$0xf]
    %v935 = vrot.slane %v755, 1
    %v940 = vunpack.c.l.b16 %v931
    %v941 = vunpack.c.l.b16 %v932
    %v942 = vunpack.c.l.b16 %v933
    %v943 = vunpack.c.l.b16 %v934
    %v944 = vpack.c.b16 %v941, %v940
    %v945 = vpack.c.b16 %v943, %v942
    %v949 = vsel %vm769, %v935, 0
    %951 = vmatprep.subr.bf16.mxu0 0
    %952 = vmatpush1.bf16.msra.mxu0 0
    %953 = vmatprep.subr.bf16.mxu0 0
    %954 = vmatpush1.bf16.msra.mxu0 0
    %955 = vmatprep.subr.bf16.mxu0 0
    %956 = vmatpush1.bf16.msra.mxu0 0
    %957 = vmatprep.subr.bf16.mxu0 0
    %958 = vmatpush1.bf16.msra.mxu0 0
    %959 = vmatprep.subr.bf16.mxu0 0
    %960 = vmatpush1.bf16.msra.mxu0 0
    %961 = vmatprep.subr.bf16.mxu0 0
    %962 = vmatpush1.bf16.msra.mxu0 0
    %963 = vmatprep.subr.bf16.mxu0 0
    %964 = vmatpush1.bf16.msra.mxu0 %v945
    %965 = vmatprep.subr.bf16.mxu0 0
    %966 = vmatpush1.bf16.msra.mxu0 %v944
    %967 = vmatprep.subr.bf16.mxu0 0
    %968 = vmatpush2.bf16.msra.mxu0 0
    %969 = vmatprep.subr.bf16.mxu0 0
    %970 = vmatpush2.bf16.msra.mxu0 0
    %971 = vmatprep.subr.bf16.mxu0 0
    %972 = vmatpush2.bf16.msra.mxu0 0
    %973 = vmatprep.subr.bf16.mxu0 0
    %974 = vmatpush2.bf16.msra.mxu0 0
    %975 = vmatprep.subr.bf16.mxu0 0
    %976 = vmatpush2.bf16.msra.mxu0 0
    %977 = vmatprep.subr.bf16.mxu0 0
    %978 = vmatpush2.bf16.msra.mxu0 0
    %979 = vmatprep.subr.bf16.mxu0 0
    %980 = vmatpush2.bf16.msra.mxu0 0
    %981 = vmatprep.subr.bf16.mxu0 0
    %982 = vmatpush2.bf16.msra.mxu0 0
    %983 = vmatprep.mubr.bf16.mxu0 0
    %984 = vmatmul.mubr.bf16.gmra.mxu0 %v949
    %v985 = vpop.f32.mrf.mxu0
    %v986 = vadd.f32 0.0, %v985
    %v987 = vpop.f32.mrf.mxu0
    %v988 = vpop.f32.mrf.mxu0
    %v989 = vpop.f32.mrf.mxu0
    %990 = vdwg.mxu0
    %v991 = vadd.f32 %v929, %v986
    %s992 = scalar_lea.vmem [#allocation7], 64
    %v993 = vld [vmem:[%s992] sm:$0xf]
    %v994 = vld [vmem:[%s992 + $0x4] sm:$0xf]
    %v995 = vld [vmem:[%s992 + $0x8] sm:$0xf]
    %v996 = vld [vmem:[%s992 + $0xc] sm:$0xf]
    %v997 = vrot.slane %v744, 2
    %v1002 = vunpack.c.l.b16 %v993
    %v1003 = vunpack.c.l.b16 %v994
    %v1004 = vunpack.c.l.b16 %v995
    %v1005 = vunpack.c.l.b16 %v996
    %v1006 = vpack.c.b16 %v1003, %v1002
    %v1007 = vpack.c.b16 %v1005, %v1004
    %v1011 = vsel %vm769, %v997, 0
    %1013 = vmatprep.subr.bf16.mxu0 0
    %1014 = vmatpush1.bf16.msra.mxu0 0
    %1015 = vmatprep.subr.bf16.mxu0 0
    %1016 = vmatpush1.bf16.msra.mxu0 0
    %1017 = vmatprep.subr.bf16.mxu0 0
    %1018 = vmatpush1.bf16.msra.mxu0 0
    %1019 = vmatprep.subr.bf16.mxu0 0
    %1020 = vmatpush1.bf16.msra.mxu0 0
    %1021 = vmatprep.subr.bf16.mxu0 0
    %1022 = vmatpush1.bf16.msra.mxu0 0
    %1023 = vmatprep.subr.bf16.mxu0 0
    %1024 = vmatpush1.bf16.msra.mxu0 0
    %1025 = vmatprep.subr.bf16.mxu0 0
    %1026 = vmatpush1.bf16.msra.mxu0 %v1007
    %1027 = vmatprep.subr.bf16.mxu0 0
    %1028 = vmatpush1.bf16.msra.mxu0 %v1006
    %1029 = vmatprep.subr.bf16.mxu0 0
    %1030 = vmatpush2.bf16.msra.mxu0 0
    %1031 = vmatprep.subr.bf16.mxu0 0
    %1032 = vmatpush2.bf16.msra.mxu0 0
    %1033 = vmatprep.subr.bf16.mxu0 0
    %1034 = vmatpush2.bf16.msra.mxu0 0
    %1035 = vmatprep.subr.bf16.mxu0 0
    %1036 = vmatpush2.bf16.msra.mxu0 0
    %1037 = vmatprep.subr.bf16.mxu0 0
    %1038 = vmatpush2.bf16.msra.mxu0 0
    %1039 = vmatprep.subr.bf16.mxu0 0
    %1040 = vmatpush2.bf16.msra.mxu0 0
    %1041 = vmatprep.subr.bf16.mxu0 0
    %1042 = vmatpush2.bf16.msra.mxu0 0
    %1043 = vmatprep.subr.bf16.mxu0 0
    %1044 = vmatpush2.bf16.msra.mxu0 0
    %1045 = vmatprep.mubr.bf16.mxu0 0
    %1046 = vmatmul.mubr.bf16.gmra.mxu0 %v1011
    %v1047 = vpop.f32.mrf.mxu0
    %v1048 = vadd.f32 0.0, %v1047
    %v1049 = vpop.f32.mrf.mxu0
    %v1050 = vpop.f32.mrf.mxu0
    %v1051 = vpop.f32.mrf.mxu0
    %1052 = vdwg.mxu0
    %v1053 = vadd.f32 %v991, %v1048
    %s1054 = scalar_lea.vmem [#allocation7], 80
    %v1055 = vld [vmem:[%s1054] sm:$0xf]
    %v1056 = vld [vmem:[%s1054 + $0x4] sm:$0xf]
    %v1057 = vld [vmem:[%s1054 + $0x8] sm:$0xf]
    %v1058 = vld [vmem:[%s1054 + $0xc] sm:$0xf]
    %v1059 = vrot.slane %v755, 2
    %v1064 = vunpack.c.l.b16 %v1055
    %v1065 = vunpack.c.l.b16 %v1056
    %v1066 = vunpack.c.l.b16 %v1057
    %v1067 = vunpack.c.l.b16 %v1058
    %v1068 = vpack.c.b16 %v1065, %v1064
    %v1069 = vpack.c.b16 %v1067, %v1066
    %v1073 = vsel %vm769, %v1059, 0
    %1075 = vmatprep.subr.bf16.mxu0 0
    %1076 = vmatpush1.bf16.msra.mxu0 0
    %1077 = vmatprep.subr.bf16.mxu0 0
    %1078 = vmatpush1.bf16.msra.mxu0 0
    %1079 = vmatprep.subr.bf16.mxu0 0
    %1080 = vmatpush1.bf16.msra.mxu0 0
    %1081 = vmatprep.subr.bf16.mxu0 0
    %1082 = vmatpush1.bf16.msra.mxu0 0
    %1083 = vmatprep.subr.bf16.mxu0 0
    %1084 = vmatpush1.bf16.msra.mxu0 0
    %1085 = vmatprep.subr.bf16.mxu0 0
    %1086 = vmatpush1.bf16.msra.mxu0 0
    %1087 = vmatprep.subr.bf16.mxu0 0
    %1088 = vmatpush1.bf16.msra.mxu0 %v1069
    %1089 = vmatprep.subr.bf16.mxu0 0
    %1090 = vmatpush1.bf16.msra.mxu0 %v1068
    %1091 = vmatprep.subr.bf16.mxu0 0
    %1092 = vmatpush2.bf16.msra.mxu0 0
    %1093 = vmatprep.subr.bf16.mxu0 0
    %1094 = vmatpush2.bf16.msra.mxu0 0
    %1095 = vmatprep.subr.bf16.mxu0 0
    %1096 = vmatpush2.bf16.msra.mxu0 0
    %1097 = vmatprep.subr.bf16.mxu0 0
    %1098 = vmatpush2.bf16.msra.mxu0 0
    %1099 = vmatprep.subr.bf16.mxu0 0
    %1100 = vmatpush2.bf16.msra.mxu0 0
    %1101 = vmatprep.subr.bf16.mxu0 0
    %1102 = vmatpush2.bf16.msra.mxu0 0
    %1103 = vmatprep.subr.bf16.mxu0 0
    %1104 = vmatpush2.bf16.msra.mxu0 0
    %1105 = vmatprep.subr.bf16.mxu0 0
    %1106 = vmatpush2.bf16.msra.mxu0 0
    %1107 = vmatprep.mubr.bf16.mxu0 0
    %1108 = vmatmul.mubr.bf16.gmra.mxu0 %v1073
    %v1109 = vpop.f32.mrf.mxu0
    %v1110 = vadd.f32 0.0, %v1109
    %v1111 = vpop.f32.mrf.mxu0
    %v1112 = vpop.f32.mrf.mxu0
    %v1113 = vpop.f32.mrf.mxu0
    %1114 = vdwg.mxu0
    %v1115 = vadd.f32 %v1053, %v1110
    %s1116 = scalar_lea.vmem [#allocation7], 96
    %v1117 = vld [vmem:[%s1116] sm:$0xf]
    %v1118 = vld [vmem:[%s1116 + $0x4] sm:$0xf]
    %v1119 = vld [vmem:[%s1116 + $0x8] sm:$0xf]
    %v1120 = vld [vmem:[%s1116 + $0xc] sm:$0xf]
    %v1121 = vrot.slane %v744, 3
    %v1126 = vunpack.c.l.b16 %v1117
    %v1127 = vunpack.c.l.b16 %v1118
    %v1128 = vunpack.c.l.b16 %v1119
    %v1129 = vunpack.c.l.b16 %v1120
    %v1130 = vpack.c.b16 %v1127, %v1126
    %v1131 = vpack.c.b16 %v1129, %v1128
    %v1135 = vsel %vm769, %v1121, 0
    %1137 = vmatprep.subr.bf16.mxu0 0
    %1138 = vmatpush1.bf16.msra.mxu0 0
    %1139 = vmatprep.subr.bf16.mxu0 0
    %1140 = vmatpush1.bf16.msra.mxu0 0
    %1141 = vmatprep.subr.bf16.mxu0 0
    %1142 = vmatpush1.bf16.msra.mxu0 0
    %1143 = vmatprep.subr.bf16.mxu0 0
    %1144 = vmatpush1.bf16.msra.mxu0 0
    %1145 = vmatprep.subr.bf16.mxu0 0
    %1146 = vmatpush1.bf16.msra.mxu0 0
    %1147 = vmatprep.subr.bf16.mxu0 0
    %1148 = vmatpush1.bf16.msra.mxu0 0
    %1149 = vmatprep.subr.bf16.mxu0 0
    %1150 = vmatpush1.bf16.msra.mxu0 %v1131
    %1151 = vmatprep.subr.bf16.mxu0 0
    %1152 = vmatpush1.bf16.msra.mxu0 %v1130
    %1153 = vmatprep.subr.bf16.mxu0 0
    %1154 = vmatpush2.bf16.msra.mxu0 0
    %1155 = vmatprep.subr.bf16.mxu0 0
    %1156 = vmatpush2.bf16.msra.mxu0 0
    %1157 = vmatprep.subr.bf16.mxu0 0
    %1158 = vmatpush2.bf16.msra.mxu0 0
    %1159 = vmatprep.subr.bf16.mxu0 0
    %1160 = vmatpush2.bf16.msra.mxu0 0
    %1161 = vmatprep.subr.bf16.mxu0 0
    %1162 = vmatpush2.bf16.msra.mxu0 0
    %1163 = vmatprep.subr.bf16.mxu0 0
    %1164 = vmatpush2.bf16.msra.mxu0 0
    %1165 = vmatprep.subr.bf16.mxu0 0
    %1166 = vmatpush2.bf16.msra.mxu0 0
    %1167 = vmatprep.subr.bf16.mxu0 0
    %1168 = vmatpush2.bf16.msra.mxu0 0
    %1169 = vmatprep.mubr.bf16.mxu0 0
    %1170 = vmatmul.mubr.bf16.gmra.mxu0 %v1135
    %v1171 = vpop.f32.mrf.mxu0
    %v1172 = vadd.f32 0.0, %v1171
    %v1173 = vpop.f32.mrf.mxu0
    %v1174 = vpop.f32.mrf.mxu0
    %v1175 = vpop.f32.mrf.mxu0
    %1176 = vdwg.mxu0
    %v1177 = vadd.f32 %v1115, %v1172
    %s1178 = scalar_lea.vmem [#allocation7], 112
    %v1179 = vld [vmem:[%s1178] sm:$0xf]
    %v1180 = vld [vmem:[%s1178 + $0x4] sm:$0xf]
    %v1181 = vld [vmem:[%s1178 + $0x8] sm:$0xf]
    %v1182 = vld [vmem:[%s1178 + $0xc] sm:$0xf]
    %v1183 = vrot.slane %v755, 3
    %v1188 = vunpack.c.l.b16 %v1179
    %v1189 = vunpack.c.l.b16 %v1180
    %v1190 = vunpack.c.l.b16 %v1181
    %v1191 = vunpack.c.l.b16 %v1182
    %v1192 = vpack.c.b16 %v1189, %v1188
    %v1193 = vpack.c.b16 %v1191, %v1190
    %v1197 = vsel %vm769, %v1183, 0
    %1199 = vmatprep.subr.bf16.mxu0 0
    %1200 = vmatpush1.bf16.msra.mxu0 0
    %1201 = vmatprep.subr.bf16.mxu0 0
    %1202 = vmatpush1.bf16.msra.mxu0 0
    %1203 = vmatprep.subr.bf16.mxu0 0
    %1204 = vmatpush1.bf16.msra.mxu0 0
    %1205 = vmatprep.subr.bf16.mxu0 0
    %1206 = vmatpush1.bf16.msra.mxu0 0
    %1207 = vmatprep.subr.bf16.mxu0 0
    %1208 = vmatpush1.bf16.msra.mxu0 0
    %1209 = vmatprep.subr.bf16.mxu0 0
    %1210 = vmatpush1.bf16.msra.mxu0 0
    %1211 = vmatprep.subr.bf16.mxu0 0
    %1212 = vmatpush1.bf16.msra.mxu0 %v1193
    %1213 = vmatprep.subr.bf16.mxu0 0
    %1214 = vmatpush1.bf16.msra.mxu0 %v1192
    %1215 = vmatprep.subr.bf16.mxu0 0
    %1216 = vmatpush2.bf16.msra.mxu0 0
    %1217 = vmatprep.subr.bf16.mxu0 0
    %1218 = vmatpush2.bf16.msra.mxu0 0
    %1219 = vmatprep.subr.bf16.mxu0 0
    %1220 = vmatpush2.bf16.msra.mxu0 0
    %1221 = vmatprep.subr.bf16.mxu0 0
    %1222 = vmatpush2.bf16.msra.mxu0 0
    %1223 = vmatprep.subr.bf16.mxu0 0
    %1224 = vmatpush2.bf16.msra.mxu0 0
    %1225 = vmatprep.subr.bf16.mxu0 0
    %1226 = vmatpush2.bf16.msra.mxu0 0
    %1227 = vmatprep.subr.bf16.mxu0 0
    %1228 = vmatpush2.bf16.msra.mxu0 0
    %1229 = vmatprep.subr.bf16.mxu0 0
    %1230 = vmatpush2.bf16.msra.mxu0 0
    %1231 = vmatprep.mubr.bf16.mxu0 0
    %1232 = vmatmul.mubr.bf16.gmra.mxu0 %v1197
    %v1233 = vpop.f32.mrf.mxu0
    %v1234 = vadd.f32 0.0, %v1233
    %v1235 = vpop.f32.mrf.mxu0
    %v1236 = vpop.f32.mrf.mxu0
    %v1237 = vpop.f32.mrf.mxu0
    %1238 = vdwg.mxu0
    %v1239 = vadd.f32 %v1177, %v1234
    %v1240 = vld [vmem:[%s6] sm:$0x1]
    %v1241 = vadd.f32 %v1239, %v1240
    %v1242 = vmax.f32 %v1241, 0.0
    %s1243 = scalar_lea.vmem %s6, 1
    %v1244 = vld [vmem:[%s1243] sm:$0x1]
    %v1245 = vmul.f32 %v1242, %v1244
    %s1246 = scalar_lea.vmem %s6, 2
    %v1247 = vld [vmem:[%s1246] sm:$0x1]
    %v1248 = vadd.f32 %v1245, %v1247
    %v1249 = vpack.c.bf16 %v1248, %v1248
    %v1250 = vld [vmem:[#allocation9] sm:$0xf]
    %v1251 = vld [vmem:[#allocation9 + $0x4] sm:$0xf]
    %v1252 = vld [vmem:[#allocation9 + $0x8] sm:$0xf]
    %v1253 = vld [vmem:[#allocation9 + $0xc] sm:$0xf]
    %v1254 = vld [vmem:[#allocation9 + $0x10] sm:$0xf]
    %v1255 = vld [vmem:[#allocation9 + $0x14] sm:$0xf]
    %v1256 = vld [vmem:[#allocation9 + $0x18] sm:$0xf]
    %v1257 = vld [vmem:[#allocation9 + $0x1c] sm:$0xf]
    %v1258 = vld [vmem:[%s8] sm:$0x1]
    %v1267 = vunpack.c.l.b16 %v1250
    %v1268 = vunpack.c.l.b16 %v1251
    %v1269 = vunpack.c.l.b16 %v1252
    %v1270 = vunpack.c.l.b16 %v1253
    %v1271 = vunpack.c.l.b16 %v1254
    %v1272 = vunpack.c.l.b16 %v1255
    %v1273 = vunpack.c.l.b16 %v1256
    %v1274 = vunpack.c.l.b16 %v1257
    %v1275 = vpack.c.b16 %v1268, %v1267
    %v1276 = vpack.c.b16 %v1270, %v1269
    %v1277 = vpack.c.b16 %v1272, %v1271
    %v1278 = vpack.c.b16 %v1274, %v1273
    %v1284 = vsel %vm658, %v1249, 0
    %1286 = vmatprep.subr.bf16.mxu0 0
    %1287 = vmatpush1.bf16.msra.mxu0 0
    %1288 = vmatprep.subr.bf16.mxu0 0
    %1289 = vmatpush1.bf16.msra.mxu0 0
    %1290 = vmatprep.subr.bf16.mxu0 0
    %1291 = vmatpush1.bf16.msra.mxu0 0
    %1292 = vmatprep.subr.bf16.mxu0 0
    %1293 = vmatpush1.bf16.msra.mxu0 0
    %1294 = vmatprep.subr.bf16.mxu0 0
    %1295 = vmatpush1.bf16.msra.mxu0 %v1278
    %1296 = vmatprep.subr.bf16.mxu0 0
    %1297 = vmatpush1.bf16.msra.mxu0 %v1277
    %1298 = vmatprep.subr.bf16.mxu0 0
    %1299 = vmatpush1.bf16.msra.mxu0 %v1276
    %1300 = vmatprep.subr.bf16.mxu0 0
    %1301 = vmatpush1.bf16.msra.mxu0 %v1275
    %1302 = vmatprep.subr.bf16.mxu0 0
    %1303 = vmatpush2.bf16.msra.mxu0 0
    %1304 = vmatprep.subr.bf16.mxu0 0
    %1305 = vmatpush2.bf16.msra.mxu0 0
    %1306 = vmatprep.subr.bf16.mxu0 0
    %1307 = vmatpush2.bf16.msra.mxu0 0
    %1308 = vmatprep.subr.bf16.mxu0 0
    %1309 = vmatpush2.bf16.msra.mxu0 0
    %1310 = vmatprep.subr.bf16.mxu0 0
    %1311 = vmatpush2.bf16.msra.mxu0 0
    %1312 = vmatprep.subr.bf16.mxu0 0
    %1313 = vmatpush2.bf16.msra.mxu0 0
    %1314 = vmatprep.subr.bf16.mxu0 0
    %1315 = vmatpush2.bf16.msra.mxu0 0
    %1316 = vmatprep.subr.bf16.mxu0 0
    %1317 = vmatpush2.bf16.msra.mxu0 0
    %1318 = vmatprep.mubr.bf16.mxu0 0
    %1319 = vmatmul.mubr.bf16.gmra.mxu0 %v1284
    %v1320 = vpop.f32.mrf.mxu0
    %v1321 = vadd.f32 %v1258, %v1320
    %v1322 = vpop.f32.mrf.mxu0
    %v1323 = vpop.f32.mrf.mxu0
    %v1324 = vpop.f32.mrf.mxu0
    %1325 = vdwg.mxu0
    %vm1326 = vcmask 40960
    %1327 = vst.msk [vmem:[%s9] sm:$0x1] %vm1326, %v1321
    // Predicated region
    $region58: #{_lambda_.1} parent=1 // pred_check
      _
    $region59: #{_lambda_.1} parent=1 // pred_check_branch
      %1329 = sbr.rel (0) target = $region61
    $region60: #{_lambda_.1} parent=1 // pred_region
      _
    $region61: #{_lambda_.1} parent=1 // pred_fallthru
      _
    // Predicated region
    $region62: #{_lambda_.1} parent=1 // pred_check
      _
    $region63: #{_lambda_.1} parent=1 // pred_check_branch
      %1331 = sbr.rel (0) target = $region65
    $region64: #{_lambda_.1} parent=1 // pred_region
      _
    $region65: #{_lambda_.1} parent=1 // pred_fallthru
      _
    %1332 = vsyncpa [#allocation3], 1
    %1333 = vsyncpa [#allocation5], 1
    %1334 = vsyncpa [#allocation8], 1

</llo_original>
